<compile_context>
chip_gen: v7x
topology: tpu7x:2x2x1
jax: 0.10.0
libtpu: 0.0.40
codegen_flags: <defaults>
</compile_context>

<pallas_src>
import numpy as np
import jax
import jax.numpy as jnp
from jax import lax
from jax.experimental import pallas as pl
from jax.experimental.pallas import tpu as pltpu  # noqa: F401  (kept for parity / future tuning)

# Static problem sizes.
N, CIN, H, W = 2, 4, 16, 16
C1, C2, NOUT = 8, 16, 10
H2, W2 = H // 2, W // 2          # 8, 8
H4, W4 = H2 // 2, W2 // 2        # 4, 4

SLAB1 = N * (H + 2)              # 36 rows: batch of vertically padded images
XR_ROWS = 40                     # pad to a multiple of 8 (need >= SLAB1 + 2)
NR1 = SLAB1                      # conv1 output slab rows (36)
SLAB2 = N * (H2 + 2)             # 20 rows: padded pooled-1 slab
P1_ROWS = SLAB2 + 2              # 22 rows (2 extra zero rows for the kh=2 band slice)
NR2 = SLAB2                      # conv2 output slab rows (20)
NP2 = N * H4                     # 8 rows: pooled-2, ordered (row-major, image-minor)


# ------------------------------ fused kernel ---------------------------------

def ensemble_fused_kernel(xr_ref, w1_ref, b1_ref, s1e_ref, s1o_ref,
                          p1e_ref, p1o_ref,
                          w2_ref, b2_ref, s2e_ref, s2o_ref,
                          p2e_ref, p2o_ref,
                          wl_ref, bl_ref, o_ref):
    """conv1+relu+pool1+conv2+relu+pool2+flatten+linear for the whole batch.

    xr_ref : (40, W*CIN)        whole-batch row layout; each image carries its
                                own zero rows for conv1 vertical padding.
    w1_ref : (3, W*CIN, W*C1)   conv1 band weights (horizontal pad baked in).
    b1_ref : (1, W*C1)
    s1e/s1o: (W*C1, W2*C1)      pool1 even/odd pixel-block selectors.
    p1e/p1o: (22, 36)           pool1 even/odd row selectors; zero rows emit
                                conv2's vertical padding directly.
    w2_ref : (3, W2*C1, W2*C2)  conv2 band weights.
    b2_ref : (1, W2*C2)
    s2e/s2o: (W2*C2, W4*C2)     pool2 pixel-block selectors.
    p2e/p2o: (8, 20)            pool2 row selectors, output ordered (i*N + n).
    wl_ref : (H4, W4*C2, NOUT)  linear weight, permuted to NHWC row layout.
    bl_ref : (1, NOUT)
    o_ref  : (N, NOUT)
    """
    f32 = jnp.float32

    # ---- conv1 (3x3, pad 1) + ReLU over the whole batch slab ----------------
    acc1 = jnp.dot(xr_ref[0:NR1, :], w1_ref[0], preferred_element_type=f32)
    for kh in range(1, 3):
        acc1 = acc1 + jnp.dot(xr_ref[kh:kh + NR1, :], w1_ref[kh],
                              preferred_element_type=f32)
    y1 = jnp.maximum(acc1 + b1_ref[...], 0.0)                       # (36, 128)

    # ---- maxpool1 2x2 via selection matmuls ---------------------------------
    # Column (pixel) max, then row max; the row selectors also insert conv2's
    # vertical zero-padding rows (all-zero selector rows).
    cmax1 = jnp.maximum(
        jnp.dot(y1, s1e_ref[...], preferred_element_type=f32),
        jnp.dot(y1, s1o_ref[...], preferred_element_type=f32))      # (36, 64)
    x2 = jnp.maximum(
        jnp.dot(p1e_ref[...], cmax1, preferred_element_type=f32),
        jnp.dot(p1o_ref[...], cmax1, preferred_element_type=f32))   # (22, 64)

    # ---- conv2 (3x3, pad 1) + ReLU over the padded pooled slab --------------
    acc2 = jnp.dot(x2[0:NR2, :], w2_ref[0], preferred_element_type=f32)
    for kh in range(1, 3):
        acc2 = acc2 + jnp.dot(x2[kh:kh + NR2, :], w2_ref[kh],
                              preferred_element_type=f32)
    y2 = jnp.maximum(acc2 + b2_ref[...], 0.0)                       # (20, 128)

    # ---- maxpool2 2x2, rows re-ordered to (spatial-row-major, image-minor) --
    cmax2 = jnp.maximum(
        jnp.dot(y2, s2e_ref[...], preferred_element_type=f32),
        jnp.dot(y2, s2o_ref[...], preferred_element_type=f32))      # (20, 64)
    pooled2 = jnp.maximum(
        jnp.dot(p2e_ref[...], cmax2, preferred_element_type=f32),
        jnp.dot(p2o_ref[...], cmax2, preferred_element_type=f32))   # (8, 64)

    # ---- flatten + linear head (NCHW flatten order folded into wl) ----------
    out = jnp.dot(pooled2[0:N, :], wl_ref[0], preferred_element_type=f32)
    for i in range(1, H4):
        out = out + jnp.dot(pooled2[i * N:(i + 1) * N, :], wl_ref[i],
                            preferred_element_type=f32)
    o_ref[...] = out + bl_ref[...]                                  # (N, 10)


# -------------------------------- wrapper -------------------------------------

def ensemble_forward(x_nchw, params):
    """Mirrors Ensemble.forward: run conv stack, then out(x).view(-1, 10)."""
    # Tiny one-shot layout glue (fused by XLA): NCHW -> per-image row layout
    # with zero rows for conv1's vertical padding, then stack the batch.
    x_rows = jnp.transpose(x_nchw, (0, 2, 3, 1)).reshape(N, H, W * CIN)
    x_rows = jnp.pad(x_rows, ((0, 0), (1, 1), (0, 0))).reshape(SLAB1, W * CIN)
    x_rows = jnp.pad(x_rows, ((0, XR_ROWS - SLAB1), (0, 0)))        # (40, 64)

    out = pl.pallas_call(
        ensemble_fused_kernel,
        out_shape=jax.ShapeDtypeStruct((N, NOUT), jnp.float32),
    )(x_rows, params["w1r"], params["b1r"], params["s1e"], params["s1o"],
      params["p1e"], params["p1o"], params["w2r"], params["b2r"],
      params["s2e"], params["s2o"], params["p2e"], params["p2o"],
      params["wlr"], params["blr"])
    return out.reshape(-1, NOUT)                     # .view(-1, 10)


# --------------------- host-side parameter repacking --------------------------

def build_params(w1, b1, w2, b2, wl, bl):
    """Repack torch-layout weights into band / selector / permuted-head form."""
    w1 = np.asarray(w1, np.float32); b1 = np.asarray(b1, np.float32)
    w2 = np.asarray(w2, np.float32); b2 = np.asarray(b2, np.float32)
    wl = np.asarray(wl, np.float32); bl = np.asarray(bl, np.float32)

    # Band matrices: input pixel p feeds output pixel q iff kw = p - q + 1 in {0,1,2};
    # out-of-range pixels get zero blocks (= horizontal zero padding).
    w1r = np.zeros((3, W * CIN, W * C1), np.float32)
    for kh in range(3):
        for q in range(W):
            for kw in range(3):
                p = q + kw - 1
                if 0 <= p < W:
                    w1r[kh, p * CIN:(p + 1) * CIN, q * C1:(q + 1) * C1] = w1[:, :, kh, kw].T
    b1r = np.tile(b1, W)[None, :]

    w2r = np.zeros((3, W2 * C1, W2 * C2), np.float32)
    for kh in range(3):
        for q in range(W2):
            for kw in range(3):
                p = q + kw - 1
                if 0 <= p < W2:
                    w2r[kh, p * C1:(p + 1) * C1, q * C2:(q + 1) * C2] = w2[:, :, kh, kw].T
    b2r = np.tile(b2, W2)[None, :]

    def col_selectors(width, ch):
        se = np.zeros((width * ch, (width // 2) * ch), np.float32)
        so = np.zeros_like(se)
        for j in range(width // 2):
            for c in range(ch):
                se[(2 * j) * ch + c, j * ch + c] = 1.0
                so[(2 * j + 1) * ch + c, j * ch + c] = 1.0
        return se, so

    s1e, s1o = col_selectors(W, C1)
    s2e, s2o = col_selectors(W2, C2)

    # Pool-1 row selectors over the whole conv1 output slab (36 rows).
    # Target layout is the *padded* pooled-1 slab (22 rows): rows n*(H2+2) and
    # n*(H2+2)+9 plus the 2 trailing rows stay all-zero -> conv2 zero padding.
    p1e = np.zeros((P1_ROWS, NR1), np.float32)
    p1o = np.zeros_like(p1e)
    for n in range(N):
        for j in range(H2):
            k = n * (H2 + 2) + 1 + j
            p1e[k, n * (H + 2) + 2 * j] = 1.0
            p1o[k, n * (H + 2) + 2 * j + 1] = 1.0

    # Pool-2 row selectors over the conv2 output slab (20 rows), with output
    # rows ordered (i*N + n) so the head slices both images together.
    p2e = np.zeros((NP2, NR2), np.float32)
    p2o = np.zeros_like(p2e)
    for i in range(H4):
        for n in range(N):
            k = i * N + n
            p2e[k, n * (H2 + 2) + 2 * i] = 1.0
            p2o[k, n * (H2 + 2) + 2 * i + 1] = 1.0

    # Linear head: torch flatten order f = c*(H4*W4) + i*W4 + j, our layout is
    # (row i, lane j*C2 + c) -> permute weight rows once on the host.
    wlr = np.zeros((H4, W4 * C2, NOUT), np.float32)
    for i in range(H4):
        for j in range(W4):
            for c in range(C2):
                wlr[i, j * C2 + c, :] = wl[:, c * (H4 * W4) + i * W4 + j]
    blr = bl[None, :]

    names = dict(w1r=w1r, b1r=b1r, w2r=w2r, b2r=b2r,
                 s1e=s1e, s1o=s1o, p1e=p1e, p1o=p1o,
                 s2e=s2e, s2o=s2o, p2e=p2e, p2o=p2o,
                 wlr=wlr, blr=blr)
    return {k: jnp.asarray(v) for k, v in names.items()}


# ----------------------------- pure-JAX reference -----------------------------

def reference_forward(x_nchw, w1, b1, w2, b2, wl, bl):
    def conv(x, w, b):
        y = lax.conv_general_dilated(
            x, w, window_strides=(1, 1), padding="SAME",
            dimension_numbers=("NCHW", "OIHW", "NCHW"))
        return jnp.maximum(y + b[None, :, None, None], 0.0)

    def pool(x):
        n, c, h, w = x.shape
        return x.reshape(n, c, h // 2, 2, w // 2, 2).max(axis=(3, 5))

    x = pool(conv(x_nchw, w1, b1))
    x = pool(conv(x, w2, b2))
    flat = x.reshape(x.shape[0], -1)
    return (flat @ wl.T + bl).reshape(-1, NOUT)


# --------------------------------- main ----------------------------------------

if __name__ == "__main__":
    key = jax.random.PRNGKey(0)
    kx, k1, k2, k3, k4, k5, k6 = jax.random.split(key, 7)

    F = C2 * H4 * W4                                           # 16 * 4 * 4 = 256
    x = jax.random.normal(kx, (N, CIN, H, W), jnp.float32)

    # PyTorch-layout parameters (deterministic synthetic init).
    w1 = jax.random.normal(k1, (C1, CIN, 3, 3), jnp.float32) * 0.1   # OIHW
    b1 = jax.random.normal(k2, (C1,), jnp.float32) * 0.1
    w2 = jax.random.normal(k3, (C2, C1, 3, 3), jnp.float32) * 0.1    # OIHW
    b2 = jax.random.normal(k4, (C2,), jnp.float32) * 0.1
    wl = jax.random.normal(k5, (NOUT, F), jnp.float32) * 0.05        # torch Linear (out, in)
    bl = jax.random.normal(k6, (NOUT,), jnp.float32) * 0.05

    params = build_params(w1, b1, w2, b2, wl, bl)

    out = jax.block_until_ready(jax.jit(ensemble_forward)(x, params))

    ref = reference_forward(x, w1, b1, w2, b2, wl, bl)
    assert out.shape == (N, NOUT)
    assert jnp.allclose(out, ref, atol=5e-4, rtol=5e-4), "mismatch vs reference"

    print("KERNEL_OK")
</pallas_src>

<mosaic_0001>
module attributes {stable_mosaic.version = 11 : i64} {
  func.func @ensemble_fused_kernel(%arg0: memref<40x64xf32, #tpu.memory_space<vmem>>, %arg1: memref<3x64x128xf32, #tpu.memory_space<vmem>>, %arg2: memref<1x128xf32, #tpu.memory_space<vmem>>, %arg3: memref<128x64xf32, #tpu.memory_space<vmem>>, %arg4: memref<128x64xf32, #tpu.memory_space<vmem>>, %arg5: memref<22x36xf32, #tpu.memory_space<vmem>>, %arg6: memref<22x36xf32, #tpu.memory_space<vmem>>, %arg7: memref<3x64x128xf32, #tpu.memory_space<vmem>>, %arg8: memref<1x128xf32, #tpu.memory_space<vmem>>, %arg9: memref<128x64xf32, #tpu.memory_space<vmem>>, %arg10: memref<128x64xf32, #tpu.memory_space<vmem>>, %arg11: memref<8x20xf32, #tpu.memory_space<vmem>>, %arg12: memref<8x20xf32, #tpu.memory_space<vmem>>, %arg13: memref<4x64x10xf32, #tpu.memory_space<vmem>>, %arg14: memref<1x10xf32, #tpu.memory_space<vmem>>, %arg15: memref<2x10xf32, #tpu.memory_space<vmem>>) attributes {dimension_semantics = [], scalar_prefetch = 0 : i64, scratch_operands = 0 : i64, tpu.core_type = #tpu.core_type<tc>} {
    %c0 = arith.constant 0 : index
    %c0_0 = arith.constant 0 : index
    %0 = vector.load %arg0[%c0, %c0_0] : memref<40x64xf32, #tpu.memory_space<vmem>>, vector<36x64xf32>
    %c0_1 = arith.constant 0 : index
    %c0_2 = arith.constant 0 : index
    %c0_3 = arith.constant 0 : index
    %1 = vector.load %arg1[%c0_1, %c0_2, %c0_3] : memref<3x64x128xf32, #tpu.memory_space<vmem>>, vector<1x64x128xf32>
    %2 = vector.shape_cast %1 : vector<1x64x128xf32> to vector<64x128xf32>
    %cst = arith.constant dense<0.000000e+00> : vector<36x128xf32>
    %3 = tpu.matmul %0, %2, %cst {dimension_numbers = #tpu.dot_dimension_numbers<[1], [0], [0], [1], [0, 0, 1, 1], [], []>} : vector<36x64xf32>, vector<64x128xf32>, vector<36x128xf32> -> vector<36x128xf32>
    %c1 = arith.constant 1 : index
    %c0_4 = arith.constant 0 : index
    %4 = vector.load %arg0[%c1, %c0_4] : memref<40x64xf32, #tpu.memory_space<vmem>>, vector<36x64xf32>
    %c1_5 = arith.constant 1 : index
    %c0_6 = arith.constant 0 : index
    %c0_7 = arith.constant 0 : index
    %5 = vector.load %arg1[%c1_5, %c0_6, %c0_7] : memref<3x64x128xf32, #tpu.memory_space<vmem>>, vector<1x64x128xf32>
    %6 = vector.shape_cast %5 : vector<1x64x128xf32> to vector<64x128xf32>
    %cst_8 = arith.constant dense<0.000000e+00> : vector<36x128xf32>
    %7 = tpu.matmul %4, %6, %cst_8 {dimension_numbers = #tpu.dot_dimension_numbers<[1], [0], [0], [1], [0, 0, 1, 1], [], []>} : vector<36x64xf32>, vector<64x128xf32>, vector<36x128xf32> -> vector<36x128xf32>
    %8 = arith.addf %3, %7 : vector<36x128xf32>
    %c2 = arith.constant 2 : index
    %c0_9 = arith.constant 0 : index
    %9 = vector.load %arg0[%c2, %c0_9] : memref<40x64xf32, #tpu.memory_space<vmem>>, vector<36x64xf32>
    %c2_10 = arith.constant 2 : index
    %c0_11 = arith.constant 0 : index
    %c0_12 = arith.constant 0 : index
    %10 = vector.load %arg1[%c2_10, %c0_11, %c0_12] : memref<3x64x128xf32, #tpu.memory_space<vmem>>, vector<1x64x128xf32>
    %11 = vector.shape_cast %10 : vector<1x64x128xf32> to vector<64x128xf32>
    %cst_13 = arith.constant dense<0.000000e+00> : vector<36x128xf32>
    %12 = tpu.matmul %9, %11, %cst_13 {dimension_numbers = #tpu.dot_dimension_numbers<[1], [0], [0], [1], [0, 0, 1, 1], [], []>} : vector<36x64xf32>, vector<64x128xf32>, vector<36x128xf32> -> vector<36x128xf32>
    %13 = arith.addf %8, %12 : vector<36x128xf32>
    %c0_14 = arith.constant 0 : index
    %c0_15 = arith.constant 0 : index
    %14 = vector.load %arg2[%c0_14, %c0_15] : memref<1x128xf32, #tpu.memory_space<vmem>>, vector<1x128xf32>
    %15 = vector.broadcast %14 : vector<1x128xf32> to vector<36x128xf32>
    %16 = arith.addf %13, %15 : vector<36x128xf32>
    %cst_16 = arith.constant 0.000000e+00 : f32
    %17 = vector.broadcast %cst_16 : f32 to vector<36x128xf32>
    %18 = arith.maximumf %16, %17 : vector<36x128xf32>
    %c0_17 = arith.constant 0 : index
    %c0_18 = arith.constant 0 : index
    %19 = vector.load %arg3[%c0_17, %c0_18] : memref<128x64xf32, #tpu.memory_space<vmem>>, vector<128x64xf32>
    %cst_19 = arith.constant dense<0.000000e+00> : vector<36x64xf32>
    %20 = tpu.matmul %18, %19, %cst_19 {dimension_numbers = #tpu.dot_dimension_numbers<[1], [0], [0], [1], [0, 0, 1, 1], [], []>} : vector<36x128xf32>, vector<128x64xf32>, vector<36x64xf32> -> vector<36x64xf32>
    %c0_20 = arith.constant 0 : index
    %c0_21 = arith.constant 0 : index
    %21 = vector.load %arg4[%c0_20, %c0_21] : memref<128x64xf32, #tpu.memory_space<vmem>>, vector<128x64xf32>
    %cst_22 = arith.constant dense<0.000000e+00> : vector<36x64xf32>
    %22 = tpu.matmul %18, %21, %cst_22 {dimension_numbers = #tpu.dot_dimension_numbers<[1], [0], [0], [1], [0, 0, 1, 1], [], []>} : vector<36x128xf32>, vector<128x64xf32>, vector<36x64xf32> -> vector<36x64xf32>
    %23 = arith.maximumf %20, %22 : vector<36x64xf32>
    %c0_23 = arith.constant 0 : index
    %c0_24 = arith.constant 0 : index
    %24 = vector.load %arg5[%c0_23, %c0_24] : memref<22x36xf32, #tpu.memory_space<vmem>>, vector<22x36xf32>
    %cst_25 = arith.constant dense<0.000000e+00> : vector<22x64xf32>
    %25 = tpu.matmul %24, %23, %cst_25 {dimension_numbers = #tpu.dot_dimension_numbers<[1], [0], [0], [1], [0, 0, 1, 1], [], []>} : vector<22x36xf32>, vector<36x64xf32>, vector<22x64xf32> -> vector<22x64xf32>
    %c0_26 = arith.constant 0 : index
    %c0_27 = arith.constant 0 : index
    %26 = vector.load %arg6[%c0_26, %c0_27] : memref<22x36xf32, #tpu.memory_space<vmem>>, vector<22x36xf32>
    %cst_28 = arith.constant dense<0.000000e+00> : vector<22x64xf32>
    %27 = tpu.matmul %26, %23, %cst_28 {dimension_numbers = #tpu.dot_dimension_numbers<[1], [0], [0], [1], [0, 0, 1, 1], [], []>} : vector<22x36xf32>, vector<36x64xf32>, vector<22x64xf32> -> vector<22x64xf32>
    %28 = arith.maximumf %25, %27 : vector<22x64xf32>
    %29 = vector.extract_strided_slice %28 {offsets = [0, 0], sizes = [20, 64], strides = [1, 1]} : vector<22x64xf32> to vector<20x64xf32>
    %c0_29 = arith.constant 0 : index
    %c0_30 = arith.constant 0 : index
    %c0_31 = arith.constant 0 : index
    %30 = vector.load %arg7[%c0_29, %c0_30, %c0_31] : memref<3x64x128xf32, #tpu.memory_space<vmem>>, vector<1x64x128xf32>
    %31 = vector.shape_cast %30 : vector<1x64x128xf32> to vector<64x128xf32>
    %cst_32 = arith.constant dense<0.000000e+00> : vector<20x128xf32>
    %32 = tpu.matmul %29, %31, %cst_32 {dimension_numbers = #tpu.dot_dimension_numbers<[1], [0], [0], [1], [0, 0, 1, 1], [], []>} : vector<20x64xf32>, vector<64x128xf32>, vector<20x128xf32> -> vector<20x128xf32>
    %33 = vector.extract_strided_slice %28 {offsets = [1, 0], sizes = [20, 64], strides = [1, 1]} : vector<22x64xf32> to vector<20x64xf32>
    %c1_33 = arith.constant 1 : index
    %c0_34 = arith.constant 0 : index
    %c0_35 = arith.constant 0 : index
    %34 = vector.load %arg7[%c1_33, %c0_34, %c0_35] : memref<3x64x128xf32, #tpu.memory_space<vmem>>, vector<1x64x128xf32>
    %35 = vector.shape_cast %34 : vector<1x64x128xf32> to vector<64x128xf32>
    %cst_36 = arith.constant dense<0.000000e+00> : vector<20x128xf32>
    %36 = tpu.matmul %33, %35, %cst_36 {dimension_numbers = #tpu.dot_dimension_numbers<[1], [0], [0], [1], [0, 0, 1, 1], [], []>} : vector<20x64xf32>, vector<64x128xf32>, vector<20x128xf32> -> vector<20x128xf32>
    %37 = arith.addf %32, %36 : vector<20x128xf32>
    %38 = vector.extract_strided_slice %28 {offsets = [2, 0], sizes = [20, 64], strides = [1, 1]} : vector<22x64xf32> to vector<20x64xf32>
    %c2_37 = arith.constant 2 : index
    %c0_38 = arith.constant 0 : index
    %c0_39 = arith.constant 0 : index
    %39 = vector.load %arg7[%c2_37, %c0_38, %c0_39] : memref<3x64x128xf32, #tpu.memory_space<vmem>>, vector<1x64x128xf32>
    %40 = vector.shape_cast %39 : vector<1x64x128xf32> to vector<64x128xf32>
    %cst_40 = arith.constant dense<0.000000e+00> : vector<20x128xf32>
    %41 = tpu.matmul %38, %40, %cst_40 {dimension_numbers = #tpu.dot_dimension_numbers<[1], [0], [0], [1], [0, 0, 1, 1], [], []>} : vector<20x64xf32>, vector<64x128xf32>, vector<20x128xf32> -> vector<20x128xf32>
    %42 = arith.addf %37, %41 : vector<20x128xf32>
    %c0_41 = arith.constant 0 : index
    %c0_42 = arith.constant 0 : index
    %43 = vector.load %arg8[%c0_41, %c0_42] : memref<1x128xf32, #tpu.memory_space<vmem>>, vector<1x128xf32>
    %44 = vector.broadcast %43 : vector<1x128xf32> to vector<20x128xf32>
    %45 = arith.addf %42, %44 : vector<20x128xf32>
    %cst_43 = arith.constant 0.000000e+00 : f32
    %46 = vector.broadcast %cst_43 : f32 to vector<20x128xf32>
    %47 = arith.maximumf %45, %46 : vector<20x128xf32>
    %c0_44 = arith.constant 0 : index
    %c0_45 = arith.constant 0 : index
    %48 = vector.load %arg9[%c0_44, %c0_45] : memref<128x64xf32, #tpu.memory_space<vmem>>, vector<128x64xf32>
    %cst_46 = arith.constant dense<0.000000e+00> : vector<20x64xf32>
    %49 = tpu.matmul %47, %48, %cst_46 {dimension_numbers = #tpu.dot_dimension_numbers<[1], [0], [0], [1], [0, 0, 1, 1], [], []>} : vector<20x128xf32>, vector<128x64xf32>, vector<20x64xf32> -> vector<20x64xf32>
    %c0_47 = arith.constant 0 : index
    %c0_48 = arith.constant 0 : index
    %50 = vector.load %arg10[%c0_47, %c0_48] : memref<128x64xf32, #tpu.memory_space<vmem>>, vector<128x64xf32>
    %cst_49 = arith.constant dense<0.000000e+00> : vector<20x64xf32>
    %51 = tpu.matmul %47, %50, %cst_49 {dimension_numbers = #tpu.dot_dimension_numbers<[1], [0], [0], [1], [0, 0, 1, 1], [], []>} : vector<20x128xf32>, vector<128x64xf32>, vector<20x64xf32> -> vector<20x64xf32>
    %52 = arith.maximumf %49, %51 : vector<20x64xf32>
    %c0_50 = arith.constant 0 : index
    %c0_51 = arith.constant 0 : index
    %53 = vector.load %arg11[%c0_50, %c0_51] : memref<8x20xf32, #tpu.memory_space<vmem>>, vector<8x20xf32>
    %cst_52 = arith.constant dense<0.000000e+00> : vector<8x64xf32>
    %54 = tpu.matmul %53, %52, %cst_52 {dimension_numbers = #tpu.dot_dimension_numbers<[1], [0], [0], [1], [0, 0, 1, 1], [], []>} : vector<8x20xf32>, vector<20x64xf32>, vector<8x64xf32> -> vector<8x64xf32>
    %c0_53 = arith.constant 0 : index
    %c0_54 = arith.constant 0 : index
    %55 = vector.load %arg12[%c0_53, %c0_54] : memref<8x20xf32, #tpu.memory_space<vmem>>, vector<8x20xf32>
    %cst_55 = arith.constant dense<0.000000e+00> : vector<8x64xf32>
    %56 = tpu.matmul %55, %52, %cst_55 {dimension_numbers = #tpu.dot_dimension_numbers<[1], [0], [0], [1], [0, 0, 1, 1], [], []>} : vector<8x20xf32>, vector<20x64xf32>, vector<8x64xf32> -> vector<8x64xf32>
    %57 = arith.maximumf %54, %56 : vector<8x64xf32>
    %58 = vector.extract_strided_slice %57 {offsets = [0, 0], sizes = [2, 64], strides = [1, 1]} : vector<8x64xf32> to vector<2x64xf32>
    %c0_56 = arith.constant 0 : index
    %c0_57 = arith.constant 0 : index
    %c0_58 = arith.constant 0 : index
    %59 = vector.load %arg13[%c0_56, %c0_57, %c0_58] : memref<4x64x10xf32, #tpu.memory_space<vmem>>, vector<1x64x10xf32>
    %60 = vector.shape_cast %59 : vector<1x64x10xf32> to vector<64x10xf32>
    %cst_59 = arith.constant dense<0.000000e+00> : vector<2x10xf32>
    %61 = tpu.matmul %58, %60, %cst_59 {dimension_numbers = #tpu.dot_dimension_numbers<[1], [0], [0], [1], [0, 0, 1, 1], [], []>} : vector<2x64xf32>, vector<64x10xf32>, vector<2x10xf32> -> vector<2x10xf32>
    %62 = vector.extract_strided_slice %57 {offsets = [2, 0], sizes = [2, 64], strides = [1, 1]} : vector<8x64xf32> to vector<2x64xf32>
    %c1_60 = arith.constant 1 : index
    %c0_61 = arith.constant 0 : index
    %c0_62 = arith.constant 0 : index
    %63 = vector.load %arg13[%c1_60, %c0_61, %c0_62] : memref<4x64x10xf32, #tpu.memory_space<vmem>>, vector<1x64x10xf32>
    %64 = vector.shape_cast %63 : vector<1x64x10xf32> to vector<64x10xf32>
    %cst_63 = arith.constant dense<0.000000e+00> : vector<2x10xf32>
    %65 = tpu.matmul %62, %64, %cst_63 {dimension_numbers = #tpu.dot_dimension_numbers<[1], [0], [0], [1], [0, 0, 1, 1], [], []>} : vector<2x64xf32>, vector<64x10xf32>, vector<2x10xf32> -> vector<2x10xf32>
    %66 = arith.addf %61, %65 : vector<2x10xf32>
    %67 = vector.extract_strided_slice %57 {offsets = [4, 0], sizes = [2, 64], strides = [1, 1]} : vector<8x64xf32> to vector<2x64xf32>
    %c2_64 = arith.constant 2 : index
    %c0_65 = arith.constant 0 : index
    %c0_66 = arith.constant 0 : index
    %68 = vector.load %arg13[%c2_64, %c0_65, %c0_66] : memref<4x64x10xf32, #tpu.memory_space<vmem>>, vector<1x64x10xf32>
    %69 = vector.shape_cast %68 : vector<1x64x10xf32> to vector<64x10xf32>
    %cst_67 = arith.constant dense<0.000000e+00> : vector<2x10xf32>
    %70 = tpu.matmul %67, %69, %cst_67 {dimension_numbers = #tpu.dot_dimension_numbers<[1], [0], [0], [1], [0, 0, 1, 1], [], []>} : vector<2x64xf32>, vector<64x10xf32>, vector<2x10xf32> -> vector<2x10xf32>
    %71 = arith.addf %66, %70 : vector<2x10xf32>
    %72 = vector.extract_strided_slice %57 {offsets = [6, 0], sizes = [2, 64], strides = [1, 1]} : vector<8x64xf32> to vector<2x64xf32>
    %c3 = arith.constant 3 : index
    %c0_68 = arith.constant 0 : index
    %c0_69 = arith.constant 0 : index
    %73 = vector.load %arg13[%c3, %c0_68, %c0_69] : memref<4x64x10xf32, #tpu.memory_space<vmem>>, vector<1x64x10xf32>
    %74 = vector.shape_cast %73 : vector<1x64x10xf32> to vector<64x10xf32>
    %cst_70 = arith.constant dense<0.000000e+00> : vector<2x10xf32>
    %75 = tpu.matmul %72, %74, %cst_70 {dimension_numbers = #tpu.dot_dimension_numbers<[1], [0], [0], [1], [0, 0, 1, 1], [], []>} : vector<2x64xf32>, vector<64x10xf32>, vector<2x10xf32> -> vector<2x10xf32>
    %76 = arith.addf %71, %75 : vector<2x10xf32>
    %c0_71 = arith.constant 0 : index
    %c0_72 = arith.constant 0 : index
    %77 = vector.load %arg14[%c0_71, %c0_72] : memref<1x10xf32, #tpu.memory_space<vmem>>, vector<1x10xf32>
    %78 = vector.broadcast %77 : vector<1x10xf32> to vector<2x10xf32>
    %79 = arith.addf %76, %78 : vector<2x10xf32>
    %c0_73 = arith.constant 0 : index
    %c0_74 = arith.constant 0 : index
    %80 = vector.load %arg15[%c0_73, %c0_74] : memref<2x10xf32, #tpu.memory_space<vmem>>, vector<2x10xf32>
    tpu.vector_store %arg15[%c0_73, %c0_74], %79 {strides = array<i32>} : memref<2x10xf32, #tpu.memory_space<vmem>>, vector<2x10xf32>,
    return
  }
}

</mosaic_0001>

<llo_original>
// kernel: ensemble_forward.1
$region0: #{ensemble_forward.1}
  #allocation0 [shape = 'u32[]', space=smem, size = 0x4, offset = 0x4, fixed_abs, tag = 'smem constant byte address 0x4 - core index']
  #allocation1 [shape = 'u32[144,128]{1,0:T(1,128)}', space=vmem, size = 0x12000, scoped, tag = 'internal scratch']
  %s0 = inlined_call_operand.vmem [shape: f32[40,64], index: 0, kind: input, shape index: {}]
  %s1 = inlined_call_operand.vmem [shape: f32[3,64,128], index: 1, kind: input, shape index: {}]
  %s2 = inlined_call_operand.vmem [shape: f32[1,128], index: 2, kind: input, shape index: {}]
  %s3 = inlined_call_operand.vmem [shape: f32[128,64], index: 3, kind: input, shape index: {}]
  %s4 = inlined_call_operand.vmem [shape: f32[128,64], index: 4, kind: input, shape index: {}]
  %s5 = inlined_call_operand.vmem [shape: f32[22,36], index: 5, kind: input, shape index: {}]
  %s6 = inlined_call_operand.vmem [shape: f32[22,36], index: 6, kind: input, shape index: {}]
  %s7 = inlined_call_operand.vmem [shape: f32[3,64,128], index: 7, kind: input, shape index: {}]
  %s8 = inlined_call_operand.vmem [shape: f32[1,128], index: 8, kind: input, shape index: {}]
  %s9 = inlined_call_operand.vmem [shape: f32[128,64], index: 9, kind: input, shape index: {}]
  %s10 = inlined_call_operand.vmem [shape: f32[128,64], index: 10, kind: input, shape index: {}]
  %s11 = inlined_call_operand.vmem [shape: f32[8,20], index: 11, kind: input, shape index: {}]
  %s12 = inlined_call_operand.vmem [shape: f32[8,20], index: 12, kind: input, shape index: {}]
  %s13 = inlined_call_operand.vmem [shape: f32[4,64,10], index: 13, kind: input, shape index: {}]
  %s14 = inlined_call_operand.vmem [shape: f32[1,10], index: 14, kind: input, shape index: {}]
  %s15 = inlined_call_operand.hbm [shape: f32[2,10], index: 15, kind: output, shape index: {}]
  %s16 = sld [smem:[#allocation0]]
  $region70: #{ensemble_forward.1} parent=0
    _
  %s18 = ssub.s32 1, %s16
  %s19 = scalar_select 0, %s18, %s16
  $region1: #{ensemble_forward.1} parent=0
    #allocation2 [shape = 'u8[1024]{0}', space=vmem, size = 0x400, scoped, tag = 'output window, operand 0, single buffered']
    #allocation3 [shape = 's32[1]{0}', space=sflag, size = 0x4, scoped, tag = 'scoped memory for ensemble_forward.1']
    %20 = vsyncpa [#allocation3], 0
    // Predicated region
    $region2: #{ensemble_forward.1} parent=1 // pred_check
      _
    $region3: #{ensemble_forward.1} parent=1 // pred_check_branch
      %22 = sbr.rel (0) target = $region5
    $region4: #{ensemble_forward.1} parent=1 // pred_region
      _
    $region5: #{ensemble_forward.1} parent=1 // pred_fallthru
      _
    // Predicated region
    $region6: #{ensemble_forward.1} parent=1 // pred_check
      _
    $region7: #{ensemble_forward.1} parent=1 // pred_check_branch
      %24 = sbr.rel (0) target = $region9
    $region8: #{ensemble_forward.1} parent=1 // pred_region
      _
    $region9: #{ensemble_forward.1} parent=1 // pred_fallthru
      _
    // Predicated region
    $region10: #{ensemble_forward.1} parent=1 // pred_check
      _
    $region11: #{ensemble_forward.1} parent=1 // pred_check_branch
      %26 = sbr.rel (0) target = $region13
    $region12: #{ensemble_forward.1} parent=1 // pred_region
      _
    $region13: #{ensemble_forward.1} parent=1 // pred_fallthru
      _
    // Predicated region
    $region14: #{ensemble_forward.1} parent=1 // pred_check
      _
    $region15: #{ensemble_forward.1} parent=1 // pred_check_branch
      %28 = sbr.rel (0) target = $region17
    $region16: #{ensemble_forward.1} parent=1 // pred_region
      _
    $region17: #{ensemble_forward.1} parent=1 // pred_fallthru
      _
    // Predicated region
    $region18: #{ensemble_forward.1} parent=1 // pred_check
      _
    $region19: #{ensemble_forward.1} parent=1 // pred_check_branch
      %30 = sbr.rel (0) target = $region21
    $region20: #{ensemble_forward.1} parent=1 // pred_region
      _
    $region21: #{ensemble_forward.1} parent=1 // pred_fallthru
      _
    // Predicated region
    $region22: #{ensemble_forward.1} parent=1 // pred_check
      _
    $region23: #{ensemble_forward.1} parent=1 // pred_check_branch
      %32 = sbr.rel (0) target = $region25
    $region24: #{ensemble_forward.1} parent=1 // pred_region
      _
    $region25: #{ensemble_forward.1} parent=1 // pred_fallthru
      _
    // Predicated region
    $region26: #{ensemble_forward.1} parent=1 // pred_check
      _
    $region27: #{ensemble_forward.1} parent=1 // pred_check_branch
      %34 = sbr.rel (0) target = $region29
    $region28: #{ensemble_forward.1} parent=1 // pred_region
      _
    $region29: #{ensemble_forward.1} parent=1 // pred_fallthru
      _
    // Predicated region
    $region30: #{ensemble_forward.1} parent=1 // pred_check
      _
    $region31: #{ensemble_forward.1} parent=1 // pred_check_branch
      %36 = sbr.rel (0) target = $region33
    $region32: #{ensemble_forward.1} parent=1 // pred_region
      _
    $region33: #{ensemble_forward.1} parent=1 // pred_fallthru
      _
    // Predicated region
    $region34: #{ensemble_forward.1} parent=1 // pred_check
      _
    $region35: #{ensemble_forward.1} parent=1 // pred_check_branch
      %38 = sbr.rel (0) target = $region37
    $region36: #{ensemble_forward.1} parent=1 // pred_region
      _
    $region37: #{ensemble_forward.1} parent=1 // pred_fallthru
      _
    // Predicated region
    $region38: #{ensemble_forward.1} parent=1 // pred_check
      _
    $region39: #{ensemble_forward.1} parent=1 // pred_check_branch
      %40 = sbr.rel (0) target = $region41
    $region40: #{ensemble_forward.1} parent=1 // pred_region
      _
    $region41: #{ensemble_forward.1} parent=1 // pred_fallthru
      _
    // Predicated region
    $region42: #{ensemble_forward.1} parent=1 // pred_check
      _
    $region43: #{ensemble_forward.1} parent=1 // pred_check_branch
      %42 = sbr.rel (0) target = $region45
    $region44: #{ensemble_forward.1} parent=1 // pred_region
      _
    $region45: #{ensemble_forward.1} parent=1 // pred_fallthru
      _
    // Predicated region
    $region46: #{ensemble_forward.1} parent=1 // pred_check
      _
    $region47: #{ensemble_forward.1} parent=1 // pred_check_branch
      %44 = sbr.rel (0) target = $region49
    $region48: #{ensemble_forward.1} parent=1 // pred_region
      _
    $region49: #{ensemble_forward.1} parent=1 // pred_fallthru
      _
    // Predicated region
    $region50: #{ensemble_forward.1} parent=1 // pred_check
      _
    $region51: #{ensemble_forward.1} parent=1 // pred_check_branch
      %46 = sbr.rel (0) target = $region53
    $region52: #{ensemble_forward.1} parent=1 // pred_region
      _
    $region53: #{ensemble_forward.1} parent=1 // pred_fallthru
      _
    // Predicated region
    $region54: #{ensemble_forward.1} parent=1 // pred_check
      _
    $region55: #{ensemble_forward.1} parent=1 // pred_check_branch
      %48 = sbr.rel (0) target = $region57
    $region56: #{ensemble_forward.1} parent=1 // pred_region
      _
    $region57: #{ensemble_forward.1} parent=1 // pred_fallthru
      _
    // Predicated region
    $region58: #{ensemble_forward.1} parent=1 // pred_check
      _
    $region59: #{ensemble_forward.1} parent=1 // pred_check_branch
      %50 = sbr.rel (0) target = $region61
    $region60: #{ensemble_forward.1} parent=1 // pred_region
      _
    $region61: #{ensemble_forward.1} parent=1 // pred_fallthru
      _
    %v51 = vld [vmem:[%s0] sm:$0xff]
    %v52 = vld [vmem:[%s0 + $0x8] sm:$0xff]
    %v53 = vld [vmem:[%s0 + $0x10] sm:$0xff]
    %v54 = vld [vmem:[%s0 + $0x18] sm:$0xff]
    %v55 = vld [vmem:[%s0 + $0x20] sm:$0xf]
    %v56 = vld [vmem:[%s1] sm:$0xff]
    %v57 = vld [vmem:[%s1 + $0x8] sm:$0xff]
    %v58 = vld [vmem:[%s1 + $0x10] sm:$0xff]
    %v59 = vld [vmem:[%s1 + $0x18] sm:$0xff]
    %v60 = vld [vmem:[%s1 + $0x20] sm:$0xff]
    %v61 = vld [vmem:[%s1 + $0x28] sm:$0xff]
    %v62 = vld [vmem:[%s1 + $0x30] sm:$0xff]
    %v63 = vld [vmem:[%s1 + $0x38] sm:$0xff]
    %v64 = vld [vmem:[%s0 + $0x1] sm:$0xff]
    %v65 = vld [vmem:[%s0 + $0x9] sm:$0xff]
    %v66 = vld [vmem:[%s0 + $0x11] sm:$0xff]
    %v67 = vld [vmem:[%s0 + $0x19] sm:$0xff]
    %v68 = vld [vmem:[%s0 + $0x21] sm:$0xf]
    %s69 = scalar_lea.vmem %s1, 64
    %v70 = vld [vmem:[%s69] sm:$0xff]
    %v71 = vld [vmem:[%s69 + $0x8] sm:$0xff]
    %v72 = vld [vmem:[%s69 + $0x10] sm:$0xff]
    %v73 = vld [vmem:[%s69 + $0x18] sm:$0xff]
    %v74 = vld [vmem:[%s69 + $0x20] sm:$0xff]
    %v75 = vld [vmem:[%s69 + $0x28] sm:$0xff]
    %v76 = vld [vmem:[%s69 + $0x30] sm:$0xff]
    %v77 = vld [vmem:[%s69 + $0x38] sm:$0xff]
    %vm78 = vcmask 523264
    %v80 = vsel %vm78, %v64, 0
    %v83 = vsel %vm78, %v65, 0
    %v86 = vsel %vm78, %v66, 0
    %v89 = vsel %vm78, %v67, 0
    %v92 = vsel %vm78, %v68, 0
    %94 = vmatprep.subr.mxu0 0.0
    %95 = vmatpush1.msra.mxu0 %v70
    %96 = vmatprep.subr.mxu0 0.0
    %97 = vmatpush1.msra.mxu0 %v71
    %98 = vmatprep.subr.mxu0 0.0
    %99 = vmatpush1.msra.mxu0 %v72
    %100 = vmatprep.subr.mxu0 0.0
    %101 = vmatpush1.msra.mxu0 %v73
    %102 = vmatprep.subr.mxu0 0.0
    %103 = vmatpush1.msra.mxu0 %v74
    %104 = vmatprep.subr.mxu0 0.0
    %105 = vmatpush1.msra.mxu0 %v75
    %106 = vmatprep.subr.mxu0 0.0
    %107 = vmatpush1.msra.mxu0 %v76
    %108 = vmatprep.subr.mxu0 0.0
    %109 = vmatpush1.msra.mxu0 %v77
    %110 = vmatprep.subr.mxu0 0.0
    %111 = vmatpush1.msra.mxu0 0.0
    %112 = vmatprep.subr.mxu0 0.0
    %113 = vmatpush1.msra.mxu0 0.0
    %114 = vmatprep.subr.mxu0 0.0
    %115 = vmatpush1.msra.mxu0 0.0
    %116 = vmatprep.subr.mxu0 0.0
    %117 = vmatpush1.msra.mxu0 0.0
    %118 = vmatprep.subr.mxu0 0.0
    %119 = vmatpush1.msra.mxu0 0.0
    %120 = vmatprep.subr.mxu0 0.0
    %121 = vmatpush1.msra.mxu0 0.0
    %122 = vmatprep.subr.mxu0 0.0
    %123 = vmatpush1.msra.mxu0 0.0
    %124 = vmatprep.subr.mxu0 0.0
    %125 = vmatpush1.msra.mxu0 0.0
    %126 = vmatprep.subr.mxu0 0.0
    %127 = vmatpush1.msra.mxu0 0.0
    %128 = vmatprep.subr.mxu0 0.0
    %129 = vmatpush1.msra.mxu0 0.0
    %130 = vmatprep.subr.mxu0 0.0
    %131 = vmatpush1.msra.mxu0 0.0
    %132 = vmatprep.subr.mxu0 0.0
    %133 = vmatpush1.msra.mxu0 0.0
    %134 = vmatprep.subr.mxu0 0.0
    %135 = vmatpush1.msra.mxu0 0.0
    %136 = vmatprep.subr.mxu0 0.0
    %137 = vmatpush1.msra.mxu0 0.0
    %138 = vmatprep.subr.mxu0 0.0
    %139 = vmatpush1.msra.mxu0 0.0
    %140 = vmatprep.subr.mxu0 0.0
    %141 = vmatpush1.msra.mxu0 0.0
    %142 = vmatprep.subr.mxu0 0.0
    %143 = vmatpush1.msra.mxu0 0.0
    %144 = vmatprep.subr.mxu0 0.0
    %145 = vmatpush1.msra.mxu0 0.0
    %146 = vmatprep.subr.mxu0 0.0
    %147 = vmatpush1.msra.mxu0 0.0
    %148 = vmatprep.subr.mxu0 0.0
    %149 = vmatpush1.msra.mxu0 0.0
    %150 = vmatprep.subr.mxu0 0.0
    %151 = vmatpush1.msra.mxu0 0.0
    %152 = vmatprep.subr.mxu0 0.0
    %153 = vmatpush1.msra.mxu0 0.0
    %154 = vmatprep.subr.mxu0 0.0
    %155 = vmatpush1.msra.mxu0 0.0
    %156 = vmatprep.subr.mxu0 0.0
    %157 = vmatpush1.msra.mxu0 0.0
    %158 = vmatprep.mubr.f32.mxu0 0.0
    %159 = vmatmul.mubr.f32.gmra.mrb[0].mxu0 %v80
    %v160 = vpop.f32.mrb[0].mxu0
    %v161 = vadd.f32 0.0, %v160
    %v162 = vpop.f32.mrb[0].mxu0
    %163 = vmatprep.mubr.f32.mxu0 0.0
    %164 = vmatmul.mubr.f32.gmra.mrb[0].mxu0 %v83
    %v165 = vpop.f32.mrb[0].mxu0
    %v166 = vadd.f32 0.0, %v165
    %v167 = vpop.f32.mrb[0].mxu0
    %168 = vmatprep.mubr.f32.mxu0 0.0
    %169 = vmatmul.mubr.f32.gmra.mrb[0].mxu0 %v86
    %v170 = vpop.f32.mrb[0].mxu0
    %v171 = vadd.f32 0.0, %v170
    %v172 = vpop.f32.mrb[0].mxu0
    %173 = vmatprep.mubr.f32.mxu0 0.0
    %174 = vmatmul.mubr.f32.gmra.mrb[0].mxu0 %v89
    %v175 = vpop.f32.mrb[0].mxu0
    %v176 = vadd.f32 0.0, %v175
    %v177 = vpop.f32.mrb[0].mxu0
    %178 = vmatprep.mubr.f32.mxu0 0.0
    %179 = vmatmul.mubr.f32.gmra.mrb[0].mxu0 %v92
    %v180 = vpop.f32.mrb[0].mxu0
    %v181 = vadd.f32 0.0, %v180
    %v182 = vpop.f32.mrb[0].mxu0
    %183 = vdwg.mxu0
    %v185 = vsel %vm78, %v51, 0
    %v188 = vsel %vm78, %v52, 0
    %v191 = vsel %vm78, %v53, 0
    %v194 = vsel %vm78, %v54, 0
    %v197 = vsel %vm78, %v55, 0
    %199 = vmatprep.subr.mxu0 0.0
    %200 = vmatpush1.msra.mxu0 %v56
    %201 = vmatprep.subr.mxu0 0.0
    %202 = vmatpush1.msra.mxu0 %v57
    %203 = vmatprep.subr.mxu0 0.0
    %204 = vmatpush1.msra.mxu0 %v58
    %205 = vmatprep.subr.mxu0 0.0
    %206 = vmatpush1.msra.mxu0 %v59
    %207 = vmatprep.subr.mxu0 0.0
    %208 = vmatpush1.msra.mxu0 %v60
    %209 = vmatprep.subr.mxu0 0.0
    %210 = vmatpush1.msra.mxu0 %v61
    %211 = vmatprep.subr.mxu0 0.0
    %212 = vmatpush1.msra.mxu0 %v62
    %213 = vmatprep.subr.mxu0 0.0
    %214 = vmatpush1.msra.mxu0 %v63
    %215 = vmatprep.subr.mxu0 0.0
    %216 = vmatpush1.msra.mxu0 0.0
    %217 = vmatprep.subr.mxu0 0.0
    %218 = vmatpush1.msra.mxu0 0.0
    %219 = vmatprep.subr.mxu0 0.0
    %220 = vmatpush1.msra.mxu0 0.0
    %221 = vmatprep.subr.mxu0 0.0
    %222 = vmatpush1.msra.mxu0 0.0
    %223 = vmatprep.subr.mxu0 0.0
    %224 = vmatpush1.msra.mxu0 0.0
    %225 = vmatprep.subr.mxu0 0.0
    %226 = vmatpush1.msra.mxu0 0.0
    %227 = vmatprep.subr.mxu0 0.0
    %228 = vmatpush1.msra.mxu0 0.0
    %229 = vmatprep.subr.mxu0 0.0
    %230 = vmatpush1.msra.mxu0 0.0
    %231 = vmatprep.subr.mxu0 0.0
    %232 = vmatpush1.msra.mxu0 0.0
    %233 = vmatprep.subr.mxu0 0.0
    %234 = vmatpush1.msra.mxu0 0.0
    %235 = vmatprep.subr.mxu0 0.0
    %236 = vmatpush1.msra.mxu0 0.0
    %237 = vmatprep.subr.mxu0 0.0
    %238 = vmatpush1.msra.mxu0 0.0
    %239 = vmatprep.subr.mxu0 0.0
    %240 = vmatpush1.msra.mxu0 0.0
    %241 = vmatprep.subr.mxu0 0.0
    %242 = vmatpush1.msra.mxu0 0.0
    %243 = vmatprep.subr.mxu0 0.0
    %244 = vmatpush1.msra.mxu0 0.0
    %245 = vmatprep.subr.mxu0 0.0
    %246 = vmatpush1.msra.mxu0 0.0
    %247 = vmatprep.subr.mxu0 0.0
    %248 = vmatpush1.msra.mxu0 0.0
    %249 = vmatprep.subr.mxu0 0.0
    %250 = vmatpush1.msra.mxu0 0.0
    %251 = vmatprep.subr.mxu0 0.0
    %252 = vmatpush1.msra.mxu0 0.0
    %253 = vmatprep.subr.mxu0 0.0
    %254 = vmatpush1.msra.mxu0 0.0
    %255 = vmatprep.subr.mxu0 0.0
    %256 = vmatpush1.msra.mxu0 0.0
    %257 = vmatprep.subr.mxu0 0.0
    %258 = vmatpush1.msra.mxu0 0.0
    %259 = vmatprep.subr.mxu0 0.0
    %260 = vmatpush1.msra.mxu0 0.0
    %261 = vmatprep.subr.mxu0 0.0
    %262 = vmatpush1.msra.mxu0 0.0
    %263 = vmatprep.mubr.f32.mxu0 0.0
    %264 = vmatmul.mubr.f32.gmra.mrb[0].mxu0 %v185
    %v265 = vpop.f32.mrb[0].mxu0
    %v266 = vadd.f32 %v161, %v265
    %v267 = vpop.f32.mrb[0].mxu0
    %268 = vmatprep.mubr.f32.mxu0 0.0
    %269 = vmatmul.mubr.f32.gmra.mrb[0].mxu0 %v188
    %v270 = vpop.f32.mrb[0].mxu0
    %v271 = vadd.f32 %v166, %v270
    %v272 = vpop.f32.mrb[0].mxu0
    %273 = vmatprep.mubr.f32.mxu0 0.0
    %274 = vmatmul.mubr.f32.gmra.mrb[0].mxu0 %v191
    %v275 = vpop.f32.mrb[0].mxu0
    %v276 = vadd.f32 %v171, %v275
    %v277 = vpop.f32.mrb[0].mxu0
    %278 = vmatprep.mubr.f32.mxu0 0.0
    %279 = vmatmul.mubr.f32.gmra.mrb[0].mxu0 %v194
    %v280 = vpop.f32.mrb[0].mxu0
    %v281 = vadd.f32 %v176, %v280
    %v282 = vpop.f32.mrb[0].mxu0
    %283 = vmatprep.mubr.f32.mxu0 0.0
    %284 = vmatmul.mubr.f32.gmra.mrb[0].mxu0 %v197
    %v285 = vpop.f32.mrb[0].mxu0
    %v286 = vadd.f32 %v181, %v285
    %v287 = vpop.f32.mrb[0].mxu0
    %288 = vdwg.mxu0
    %v289 = vld [vmem:[%s0 + $0x2] sm:$0xff]
    %v290 = vld [vmem:[%s0 + $0xa] sm:$0xff]
    %v291 = vld [vmem:[%s0 + $0x12] sm:$0xff]
    %v292 = vld [vmem:[%s0 + $0x1a] sm:$0xff]
    %v293 = vld [vmem:[%s0 + $0x22] sm:$0xf]
    %s294 = scalar_lea.vmem %s1, 128
    %v295 = vld [vmem:[%s294] sm:$0xff]
    %v296 = vld [vmem:[%s294 + $0x8] sm:$0xff]
    %v297 = vld [vmem:[%s294 + $0x10] sm:$0xff]
    %v298 = vld [vmem:[%s294 + $0x18] sm:$0xff]
    %v299 = vld [vmem:[%s294 + $0x20] sm:$0xff]
    %v300 = vld [vmem:[%s294 + $0x28] sm:$0xff]
    %v301 = vld [vmem:[%s294 + $0x30] sm:$0xff]
    %v302 = vld [vmem:[%s294 + $0x38] sm:$0xff]
    %v304 = vsel %vm78, %v289, 0
    %v307 = vsel %vm78, %v290, 0
    %v310 = vsel %vm78, %v291, 0
    %v313 = vsel %vm78, %v292, 0
    %v316 = vsel %vm78, %v293, 0
    %318 = vmatprep.subr.mxu0 0.0
    %319 = vmatpush1.msra.mxu0 %v295
    %320 = vmatprep.subr.mxu0 0.0
    %321 = vmatpush1.msra.mxu0 %v296
    %322 = vmatprep.subr.mxu0 0.0
    %323 = vmatpush1.msra.mxu0 %v297
    %324 = vmatprep.subr.mxu0 0.0
    %325 = vmatpush1.msra.mxu0 %v298
    %326 = vmatprep.subr.mxu0 0.0
    %327 = vmatpush1.msra.mxu0 %v299
    %328 = vmatprep.subr.mxu0 0.0
    %329 = vmatpush1.msra.mxu0 %v300
    %330 = vmatprep.subr.mxu0 0.0
    %331 = vmatpush1.msra.mxu0 %v301
    %332 = vmatprep.subr.mxu0 0.0
    %333 = vmatpush1.msra.mxu0 %v302
    %334 = vmatprep.subr.mxu0 0.0
    %335 = vmatpush1.msra.mxu0 0.0
    %336 = vmatprep.subr.mxu0 0.0
    %337 = vmatpush1.msra.mxu0 0.0
    %338 = vmatprep.subr.mxu0 0.0
    %339 = vmatpush1.msra.mxu0 0.0
    %340 = vmatprep.subr.mxu0 0.0
    %341 = vmatpush1.msra.mxu0 0.0
    %342 = vmatprep.subr.mxu0 0.0
    %343 = vmatpush1.msra.mxu0 0.0
    %344 = vmatprep.subr.mxu0 0.0
    %345 = vmatpush1.msra.mxu0 0.0
    %346 = vmatprep.subr.mxu0 0.0
    %347 = vmatpush1.msra.mxu0 0.0
    %348 = vmatprep.subr.mxu0 0.0
    %349 = vmatpush1.msra.mxu0 0.0
    %350 = vmatprep.subr.mxu0 0.0
    %351 = vmatpush1.msra.mxu0 0.0
    %352 = vmatprep.subr.mxu0 0.0
    %353 = vmatpush1.msra.mxu0 0.0
    %354 = vmatprep.subr.mxu0 0.0
    %355 = vmatpush1.msra.mxu0 0.0
    %356 = vmatprep.subr.mxu0 0.0
    %357 = vmatpush1.msra.mxu0 0.0
    %358 = vmatprep.subr.mxu0 0.0
    %359 = vmatpush1.msra.mxu0 0.0
    %360 = vmatprep.subr.mxu0 0.0
    %361 = vmatpush1.msra.mxu0 0.0
    %362 = vmatprep.subr.mxu0 0.0
    %363 = vmatpush1.msra.mxu0 0.0
    %364 = vmatprep.subr.mxu0 0.0
    %365 = vmatpush1.msra.mxu0 0.0
    %366 = vmatprep.subr.mxu0 0.0
    %367 = vmatpush1.msra.mxu0 0.0
    %368 = vmatprep.subr.mxu0 0.0
    %369 = vmatpush1.msra.mxu0 0.0
    %370 = vmatprep.subr.mxu0 0.0
    %371 = vmatpush1.msra.mxu0 0.0
    %372 = vmatprep.subr.mxu0 0.0
    %373 = vmatpush1.msra.mxu0 0.0
    %374 = vmatprep.subr.mxu0 0.0
    %375 = vmatpush1.msra.mxu0 0.0
    %376 = vmatprep.subr.mxu0 0.0
    %377 = vmatpush1.msra.mxu0 0.0
    %378 = vmatprep.subr.mxu0 0.0
    %379 = vmatpush1.msra.mxu0 0.0
    %380 = vmatprep.subr.mxu0 0.0
    %381 = vmatpush1.msra.mxu0 0.0
    %382 = vmatprep.mubr.f32.mxu0 0.0
    %383 = vmatmul.mubr.f32.gmra.mrb[0].mxu0 %v304
    %v384 = vpop.f32.mrb[0].mxu0
    %v385 = vadd.f32 0.0, %v384
    %v386 = vpop.f32.mrb[0].mxu0
    %387 = vmatprep.mubr.f32.mxu0 0.0
    %388 = vmatmul.mubr.f32.gmra.mrb[0].mxu0 %v307
    %v389 = vpop.f32.mrb[0].mxu0
    %v390 = vadd.f32 0.0, %v389
    %v391 = vpop.f32.mrb[0].mxu0
    %392 = vmatprep.mubr.f32.mxu0 0.0
    %393 = vmatmul.mubr.f32.gmra.mrb[0].mxu0 %v310
    %v394 = vpop.f32.mrb[0].mxu0
    %v395 = vadd.f32 0.0, %v394
    %v396 = vpop.f32.mrb[0].mxu0
    %397 = vmatprep.mubr.f32.mxu0 0.0
    %398 = vmatmul.mubr.f32.gmra.mrb[0].mxu0 %v313
    %v399 = vpop.f32.mrb[0].mxu0
    %v400 = vadd.f32 0.0, %v399
    %v401 = vpop.f32.mrb[0].mxu0
    %402 = vmatprep.mubr.f32.mxu0 0.0
    %403 = vmatmul.mubr.f32.gmra.mrb[0].mxu0 %v316
    %v404 = vpop.f32.mrb[0].mxu0
    %v405 = vadd.f32 0.0, %v404
    %v406 = vpop.f32.mrb[0].mxu0
    %407 = vdwg.mxu0
    %v408 = vadd.f32 %v266, %v385
    %v409 = vadd.f32 %v271, %v390
    %v410 = vadd.f32 %v276, %v395
    %v411 = vadd.f32 %v281, %v400
    %v412 = vadd.f32 %v286, %v405
    %v413 = vld [vmem:[%s2] sm:$0x1]
    %v415 = vlaneseq
    %v416 = vshrl.u32 %v415, 7
    %v417 = vsub.s32 0, %v416
    %v418 = vrot.slane %v413, %v417
    %v420 = vadd.f32 %v408, %v418
    %v421 = vadd.f32 %v409, %v418
    %v422 = vadd.f32 %v410, %v418
    %v423 = vadd.f32 %v411, %v418
    %v424 = vadd.f32 %v412, %v418
    %v425 = vmax.f32 %v420, 0.0
    %v426 = vmax.f32 %v421, 0.0
    %v427 = vmax.f32 %v422, 0.0
    %v428 = vmax.f32 %v423, 0.0
    %v429 = vmax.f32 %v424, 0.0
    %v430 = vld [vmem:[%s3] sm:$0xff]
    %v431 = vld [vmem:[%s3 + $0x8] sm:$0xff]
    %v432 = vld [vmem:[%s3 + $0x10] sm:$0xff]
    %v433 = vld [vmem:[%s3 + $0x18] sm:$0xff]
    %v434 = vld [vmem:[%s3 + $0x20] sm:$0xff]
    %v435 = vld [vmem:[%s3 + $0x28] sm:$0xff]
    %v436 = vld [vmem:[%s3 + $0x30] sm:$0xff]
    %v437 = vld [vmem:[%s3 + $0x38] sm:$0xff]
    %v438 = vld [vmem:[%s3 + $0x40] sm:$0xff]
    %v439 = vld [vmem:[%s3 + $0x48] sm:$0xff]
    %v440 = vld [vmem:[%s3 + $0x50] sm:$0xff]
    %v441 = vld [vmem:[%s3 + $0x58] sm:$0xff]
    %v442 = vld [vmem:[%s3 + $0x60] sm:$0xff]
    %v443 = vld [vmem:[%s3 + $0x68] sm:$0xff]
    %v444 = vld [vmem:[%s3 + $0x70] sm:$0xff]
    %v445 = vld [vmem:[%s3 + $0x78] sm:$0xff]
    %446 = vmatprep.subr.mxu0 0.0
    %447 = vmatpush1.msra.mxu0 %v430
    %448 = vmatprep.subr.mxu0 0.0
    %449 = vmatpush1.msra.mxu0 %v431
    %450 = vmatprep.subr.mxu0 0.0
    %451 = vmatpush1.msra.mxu0 %v432
    %452 = vmatprep.subr.mxu0 0.0
    %453 = vmatpush1.msra.mxu0 %v433
    %454 = vmatprep.subr.mxu0 0.0
    %455 = vmatpush1.msra.mxu0 %v434
    %456 = vmatprep.subr.mxu0 0.0
    %457 = vmatpush1.msra.mxu0 %v435
    %458 = vmatprep.subr.mxu0 0.0
    %459 = vmatpush1.msra.mxu0 %v436
    %460 = vmatprep.subr.mxu0 0.0
    %461 = vmatpush1.msra.mxu0 %v437
    %462 = vmatprep.subr.mxu0 0.0
    %463 = vmatpush1.msra.mxu0 %v438
    %464 = vmatprep.subr.mxu0 0.0
    %465 = vmatpush1.msra.mxu0 %v439
    %466 = vmatprep.subr.mxu0 0.0
    %467 = vmatpush1.msra.mxu0 %v440
    %468 = vmatprep.subr.mxu0 0.0
    %469 = vmatpush1.msra.mxu0 %v441
    %470 = vmatprep.subr.mxu0 0.0
    %471 = vmatpush1.msra.mxu0 %v442
    %472 = vmatprep.subr.mxu0 0.0
    %473 = vmatpush1.msra.mxu0 %v443
    %474 = vmatprep.subr.mxu0 0.0
    %475 = vmatpush1.msra.mxu0 %v444
    %476 = vmatprep.subr.mxu0 0.0
    %477 = vmatpush1.msra.mxu0 %v445
    %478 = vmatprep.subr.mxu0 0.0
    %479 = vmatpush1.msra.mxu0 0.0
    %480 = vmatprep.subr.mxu0 0.0
    %481 = vmatpush1.msra.mxu0 0.0
    %482 = vmatprep.subr.mxu0 0.0
    %483 = vmatpush1.msra.mxu0 0.0
    %484 = vmatprep.subr.mxu0 0.0
    %485 = vmatpush1.msra.mxu0 0.0
    %486 = vmatprep.subr.mxu0 0.0
    %487 = vmatpush1.msra.mxu0 0.0
    %488 = vmatprep.subr.mxu0 0.0
    %489 = vmatpush1.msra.mxu0 0.0
    %490 = vmatprep.subr.mxu0 0.0
    %491 = vmatpush1.msra.mxu0 0.0
    %492 = vmatprep.subr.mxu0 0.0
    %493 = vmatpush1.msra.mxu0 0.0
    %494 = vmatprep.subr.mxu0 0.0
    %495 = vmatpush1.msra.mxu0 0.0
    %496 = vmatprep.subr.mxu0 0.0
    %497 = vmatpush1.msra.mxu0 0.0
    %498 = vmatprep.subr.mxu0 0.0
    %499 = vmatpush1.msra.mxu0 0.0
    %500 = vmatprep.subr.mxu0 0.0
    %501 = vmatpush1.msra.mxu0 0.0
    %502 = vmatprep.subr.mxu0 0.0
    %503 = vmatpush1.msra.mxu0 0.0
    %504 = vmatprep.subr.mxu0 0.0
    %505 = vmatpush1.msra.mxu0 0.0
    %506 = vmatprep.subr.mxu0 0.0
    %507 = vmatpush1.msra.mxu0 0.0
    %508 = vmatprep.subr.mxu0 0.0
    %509 = vmatpush1.msra.mxu0 0.0
    %510 = vmatprep.mubr.f32.mxu0 0.0
    %511 = vmatmul.mubr.f32.gmra.mrb[0].mxu0 %v425
    %v512 = vpop.f32.mrb[0].mxu0
    %v513 = vadd.f32 0.0, %v512
    %v514 = vpop.f32.mrb[0].mxu0
    %515 = vmatprep.mubr.f32.mxu0 0.0
    %516 = vmatmul.mubr.f32.gmra.mrb[0].mxu0 %v426
    %v517 = vpop.f32.mrb[0].mxu0
    %v518 = vadd.f32 0.0, %v517
    %v519 = vpop.f32.mrb[0].mxu0
    %520 = vmatprep.mubr.f32.mxu0 0.0
    %521 = vmatmul.mubr.f32.gmra.mrb[0].mxu0 %v427
    %v522 = vpop.f32.mrb[0].mxu0
    %v523 = vadd.f32 0.0, %v522
    %v524 = vpop.f32.mrb[0].mxu0
    %525 = vmatprep.mubr.f32.mxu0 0.0
    %526 = vmatmul.mubr.f32.gmra.mrb[0].mxu0 %v428
    %v527 = vpop.f32.mrb[0].mxu0
    %v528 = vadd.f32 0.0, %v527
    %v529 = vpop.f32.mrb[0].mxu0
    %530 = vmatprep.mubr.f32.mxu0 0.0
    %531 = vmatmul.mubr.f32.gmra.mrb[0].mxu0 %v429
    %v532 = vpop.f32.mrb[0].mxu0
    %v533 = vadd.f32 0.0, %v532
    %v534 = vpop.f32.mrb[0].mxu0
    %535 = vdwg.mxu0
    %v536 = vld [vmem:[%s4] sm:$0xff]
    %v537 = vld [vmem:[%s4 + $0x8] sm:$0xff]
    %v538 = vld [vmem:[%s4 + $0x10] sm:$0xff]
    %v539 = vld [vmem:[%s4 + $0x18] sm:$0xff]
    %v540 = vld [vmem:[%s4 + $0x20] sm:$0xff]
    %v541 = vld [vmem:[%s4 + $0x28] sm:$0xff]
    %v542 = vld [vmem:[%s4 + $0x30] sm:$0xff]
    %v543 = vld [vmem:[%s4 + $0x38] sm:$0xff]
    %v544 = vld [vmem:[%s4 + $0x40] sm:$0xff]
    %v545 = vld [vmem:[%s4 + $0x48] sm:$0xff]
    %v546 = vld [vmem:[%s4 + $0x50] sm:$0xff]
    %v547 = vld [vmem:[%s4 + $0x58] sm:$0xff]
    %v548 = vld [vmem:[%s4 + $0x60] sm:$0xff]
    %v549 = vld [vmem:[%s4 + $0x68] sm:$0xff]
    %v550 = vld [vmem:[%s4 + $0x70] sm:$0xff]
    %v551 = vld [vmem:[%s4 + $0x78] sm:$0xff]
    %552 = vmatprep.subr.mxu0 0.0
    %553 = vmatpush1.msra.mxu0 %v536
    %554 = vmatprep.subr.mxu0 0.0
    %555 = vmatpush1.msra.mxu0 %v537
    %556 = vmatprep.subr.mxu0 0.0
    %557 = vmatpush1.msra.mxu0 %v538
    %558 = vmatprep.subr.mxu0 0.0
    %559 = vmatpush1.msra.mxu0 %v539
    %560 = vmatprep.subr.mxu0 0.0
    %561 = vmatpush1.msra.mxu0 %v540
    %562 = vmatprep.subr.mxu0 0.0
    %563 = vmatpush1.msra.mxu0 %v541
    %564 = vmatprep.subr.mxu0 0.0
    %565 = vmatpush1.msra.mxu0 %v542
    %566 = vmatprep.subr.mxu0 0.0
    %567 = vmatpush1.msra.mxu0 %v543
    %568 = vmatprep.subr.mxu0 0.0
    %569 = vmatpush1.msra.mxu0 %v544
    %570 = vmatprep.subr.mxu0 0.0
    %571 = vmatpush1.msra.mxu0 %v545
    %572 = vmatprep.subr.mxu0 0.0
    %573 = vmatpush1.msra.mxu0 %v546
    %574 = vmatprep.subr.mxu0 0.0
    %575 = vmatpush1.msra.mxu0 %v547
    %576 = vmatprep.subr.mxu0 0.0
    %577 = vmatpush1.msra.mxu0 %v548
    %578 = vmatprep.subr.mxu0 0.0
    %579 = vmatpush1.msra.mxu0 %v549
    %580 = vmatprep.subr.mxu0 0.0
    %581 = vmatpush1.msra.mxu0 %v550
    %582 = vmatprep.subr.mxu0 0.0
    %583 = vmatpush1.msra.mxu0 %v551
    %584 = vmatprep.subr.mxu0 0.0
    %585 = vmatpush1.msra.mxu0 0.0
    %586 = vmatprep.subr.mxu0 0.0
    %587 = vmatpush1.msra.mxu0 0.0
    %588 = vmatprep.subr.mxu0 0.0
    %589 = vmatpush1.msra.mxu0 0.0
    %590 = vmatprep.subr.mxu0 0.0
    %591 = vmatpush1.msra.mxu0 0.0
    %592 = vmatprep.subr.mxu0 0.0
    %593 = vmatpush1.msra.mxu0 0.0
    %594 = vmatprep.subr.mxu0 0.0
    %595 = vmatpush1.msra.mxu0 0.0
    %596 = vmatprep.subr.mxu0 0.0
    %597 = vmatpush1.msra.mxu0 0.0
    %598 = vmatprep.subr.mxu0 0.0
    %599 = vmatpush1.msra.mxu0 0.0
    %600 = vmatprep.subr.mxu0 0.0
    %601 = vmatpush1.msra.mxu0 0.0
    %602 = vmatprep.subr.mxu0 0.0
    %603 = vmatpush1.msra.mxu0 0.0
    %604 = vmatprep.subr.mxu0 0.0
    %605 = vmatpush1.msra.mxu0 0.0
    %606 = vmatprep.subr.mxu0 0.0
    %607 = vmatpush1.msra.mxu0 0.0
    %608 = vmatprep.subr.mxu0 0.0
    %609 = vmatpush1.msra.mxu0 0.0
    %610 = vmatprep.subr.mxu0 0.0
    %611 = vmatpush1.msra.mxu0 0.0
    %612 = vmatprep.subr.mxu0 0.0
    %613 = vmatpush1.msra.mxu0 0.0
    %614 = vmatprep.subr.mxu0 0.0
    %615 = vmatpush1.msra.mxu0 0.0
    %616 = vmatprep.mubr.f32.mxu0 0.0
    %617 = vmatmul.mubr.f32.gmra.mrb[0].mxu0 %v425
    %v618 = vpop.f32.mrb[0].mxu0
    %v619 = vadd.f32 0.0, %v618
    %v620 = vpop.f32.mrb[0].mxu0
    %621 = vmatprep.mubr.f32.mxu0 0.0
    %622 = vmatmul.mubr.f32.gmra.mrb[0].mxu0 %v426
    %v623 = vpop.f32.mrb[0].mxu0
    %v624 = vadd.f32 0.0, %v623
    %v625 = vpop.f32.mrb[0].mxu0
    %626 = vmatprep.mubr.f32.mxu0 0.0
    %627 = vmatmul.mubr.f32.gmra.mrb[0].mxu0 %v427
    %v628 = vpop.f32.mrb[0].mxu0
    %v629 = vadd.f32 0.0, %v628
    %v630 = vpop.f32.mrb[0].mxu0
    %631 = vmatprep.mubr.f32.mxu0 0.0
    %632 = vmatmul.mubr.f32.gmra.mrb[0].mxu0 %v428
    %v633 = vpop.f32.mrb[0].mxu0
    %v634 = vadd.f32 0.0, %v633
    %v635 = vpop.f32.mrb[0].mxu0
    %636 = vmatprep.mubr.f32.mxu0 0.0
    %637 = vmatmul.mubr.f32.gmra.mrb[0].mxu0 %v429
    %v638 = vpop.f32.mrb[0].mxu0
    %v639 = vadd.f32 0.0, %v638
    %v640 = vpop.f32.mrb[0].mxu0
    %641 = vdwg.mxu0
    %v642 = vmax.f32 %v513, %v619
    %v643 = vmax.f32 %v518, %v624
    %v644 = vmax.f32 %v523, %v629
    %v645 = vmax.f32 %v528, %v634
    %v646 = vmax.f32 %v533, %v639
    %v647 = vld [vmem:[%s5] sm:$0xff]
    %v648 = vld [vmem:[%s5 + $0x8] sm:$0xff]
    %v649 = vld [vmem:[%s5 + $0x10] sm:$0x3f]
    %vm650 = vcmask 293888
    %v652 = vsel %vm650, %v647, 0
    %v655 = vsel %vm650, %v648, 0
    %v658 = vsel %vm650, %v649, 0
    %vm660 = vcmask 1043456
    %v662 = vsel %vm660, %v646, 0
    %664 = vmatprep.subr.mxu0 0.0
    %665 = vmatpush1.msra.mxu0 %v642
    %666 = vmatprep.subr.mxu0 0.0
    %667 = vmatpush1.msra.mxu0 %v643
    %668 = vmatprep.subr.mxu0 0.0
    %669 = vmatpush1.msra.mxu0 %v644
    %670 = vmatprep.subr.mxu0 0.0
    %671 = vmatpush1.msra.mxu0 %v645
    %672 = vmatprep.subr.mxu0 0.0
    %673 = vmatpush1.msra.mxu0 %v662
    %674 = vmatprep.subr.mxu0 0.0
    %675 = vmatpush1.msra.mxu0 0.0
    %676 = vmatprep.subr.mxu0 0.0
    %677 = vmatpush1.msra.mxu0 0.0
    %678 = vmatprep.subr.mxu0 0.0
    %679 = vmatpush1.msra.mxu0 0.0
    %680 = vmatprep.subr.mxu0 0.0
    %681 = vmatpush1.msra.mxu0 0.0
    %682 = vmatprep.subr.mxu0 0.0
    %683 = vmatpush1.msra.mxu0 0.0
    %684 = vmatprep.subr.mxu0 0.0
    %685 = vmatpush1.msra.mxu0 0.0
    %686 = vmatprep.subr.mxu0 0.0
    %687 = vmatpush1.msra.mxu0 0.0
    %688 = vmatprep.subr.mxu0 0.0
    %689 = vmatpush1.msra.mxu0 0.0
    %690 = vmatprep.subr.mxu0 0.0
    %691 = vmatpush1.msra.mxu0 0.0
    %692 = vmatprep.subr.mxu0 0.0
    %693 = vmatpush1.msra.mxu0 0.0
    %694 = vmatprep.subr.mxu0 0.0
    %695 = vmatpush1.msra.mxu0 0.0
    %696 = vmatprep.subr.mxu0 0.0
    %697 = vmatpush1.msra.mxu0 0.0
    %698 = vmatprep.subr.mxu0 0.0
    %699 = vmatpush1.msra.mxu0 0.0
    %700 = vmatprep.subr.mxu0 0.0
    %701 = vmatpush1.msra.mxu0 0.0
    %702 = vmatprep.subr.mxu0 0.0
    %703 = vmatpush1.msra.mxu0 0.0
    %704 = vmatprep.subr.mxu0 0.0
    %705 = vmatpush1.msra.mxu0 0.0
    %706 = vmatprep.subr.mxu0 0.0
    %707 = vmatpush1.msra.mxu0 0.0
    %708 = vmatprep.subr.mxu0 0.0
    %709 = vmatpush1.msra.mxu0 0.0
    %710 = vmatprep.subr.mxu0 0.0
    %711 = vmatpush1.msra.mxu0 0.0
    %712 = vmatprep.subr.mxu0 0.0
    %713 = vmatpush1.msra.mxu0 0.0
    %714 = vmatprep.subr.mxu0 0.0
    %715 = vmatpush1.msra.mxu0 0.0
    %716 = vmatprep.subr.mxu0 0.0
    %717 = vmatpush1.msra.mxu0 0.0
    %718 = vmatprep.subr.mxu0 0.0
    %719 = vmatpush1.msra.mxu0 0.0
    %720 = vmatprep.subr.mxu0 0.0
    %721 = vmatpush1.msra.mxu0 0.0
    %722 = vmatprep.subr.mxu0 0.0
    %723 = vmatpush1.msra.mxu0 0.0
    %724 = vmatprep.subr.mxu0 0.0
    %725 = vmatpush1.msra.mxu0 0.0
    %726 = vmatprep.subr.mxu0 0.0
    %727 = vmatpush1.msra.mxu0 0.0
    %728 = vmatprep.mubr.f32.mxu0 0.0
    %729 = vmatmul.mubr.f32.gmra.mrb[0].mxu0 %v652
    %v730 = vpop.f32.mrb[0].mxu0
    %v731 = vadd.f32 0.0, %v730
    %v732 = vpop.f32.mrb[0].mxu0
    %733 = vmatprep.mubr.f32.mxu0 0.0
    %734 = vmatmul.mubr.f32.gmra.mrb[0].mxu0 %v655
    %v735 = vpop.f32.mrb[0].mxu0
    %v736 = vadd.f32 0.0, %v735
    %v737 = vpop.f32.mrb[0].mxu0
    %738 = vmatprep.mubr.f32.mxu0 0.0
    %739 = vmatmul.mubr.f32.gmra.mrb[0].mxu0 %v658
    %v740 = vpop.f32.mrb[0].mxu0
    %v741 = vadd.f32 0.0, %v740
    %v742 = vpop.f32.mrb[0].mxu0
    %743 = vdwg.mxu0
    %v744 = vld [vmem:[%s6] sm:$0xff]
    %v745 = vld [vmem:[%s6 + $0x8] sm:$0xff]
    %v746 = vld [vmem:[%s6 + $0x10] sm:$0x3f]
    %v748 = vsel %vm650, %v744, 0
    %v751 = vsel %vm650, %v745, 0
    %v754 = vsel %vm650, %v746, 0
    %756 = vmatprep.subr.mxu0 0.0
    %757 = vmatpush1.msra.mxu0 %v642
    %758 = vmatprep.subr.mxu0 0.0
    %759 = vmatpush1.msra.mxu0 %v643
    %760 = vmatprep.subr.mxu0 0.0
    %761 = vmatpush1.msra.mxu0 %v644
    %762 = vmatprep.subr.mxu0 0.0
    %763 = vmatpush1.msra.mxu0 %v645
    %764 = vmatprep.subr.mxu0 0.0
    %765 = vmatpush1.msra.mxu0 %v662
    %766 = vmatprep.subr.mxu0 0.0
    %767 = vmatpush1.msra.mxu0 0.0
    %768 = vmatprep.subr.mxu0 0.0
    %769 = vmatpush1.msra.mxu0 0.0
    %770 = vmatprep.subr.mxu0 0.0
    %771 = vmatpush1.msra.mxu0 0.0
    %772 = vmatprep.subr.mxu0 0.0
    %773 = vmatpush1.msra.mxu0 0.0
    %774 = vmatprep.subr.mxu0 0.0
    %775 = vmatpush1.msra.mxu0 0.0
    %776 = vmatprep.subr.mxu0 0.0
    %777 = vmatpush1.msra.mxu0 0.0
    %778 = vmatprep.subr.mxu0 0.0
    %779 = vmatpush1.msra.mxu0 0.0
    %780 = vmatprep.subr.mxu0 0.0
    %781 = vmatpush1.msra.mxu0 0.0
    %782 = vmatprep.subr.mxu0 0.0
    %783 = vmatpush1.msra.mxu0 0.0
    %784 = vmatprep.subr.mxu0 0.0
    %785 = vmatpush1.msra.mxu0 0.0
    %786 = vmatprep.subr.mxu0 0.0
    %787 = vmatpush1.msra.mxu0 0.0
    %788 = vmatprep.subr.mxu0 0.0
    %789 = vmatpush1.msra.mxu0 0.0
    %790 = vmatprep.subr.mxu0 0.0
    %791 = vmatpush1.msra.mxu0 0.0
    %792 = vmatprep.subr.mxu0 0.0
    %793 = vmatpush1.msra.mxu0 0.0
    %794 = vmatprep.subr.mxu0 0.0
    %795 = vmatpush1.msra.mxu0 0.0
    %796 = vmatprep.subr.mxu0 0.0
    %797 = vmatpush1.msra.mxu0 0.0
    %798 = vmatprep.subr.mxu0 0.0
    %799 = vmatpush1.msra.mxu0 0.0
    %800 = vmatprep.subr.mxu0 0.0
    %801 = vmatpush1.msra.mxu0 0.0
    %802 = vmatprep.subr.mxu0 0.0
    %803 = vmatpush1.msra.mxu0 0.0
    %804 = vmatprep.subr.mxu0 0.0
    %805 = vmatpush1.msra.mxu0 0.0
    %806 = vmatprep.subr.mxu0 0.0
    %807 = vmatpush1.msra.mxu0 0.0
    %808 = vmatprep.subr.mxu0 0.0
    %809 = vmatpush1.msra.mxu0 0.0
    %810 = vmatprep.subr.mxu0 0.0
    %811 = vmatpush1.msra.mxu0 0.0
    %812 = vmatprep.subr.mxu0 0.0
    %813 = vmatpush1.msra.mxu0 0.0
    %814 = vmatprep.subr.mxu0 0.0
    %815 = vmatpush1.msra.mxu0 0.0
    %816 = vmatprep.subr.mxu0 0.0
    %817 = vmatpush1.msra.mxu0 0.0
    %818 = vmatprep.subr.mxu0 0.0
    %819 = vmatpush1.msra.mxu0 0.0
    %820 = vmatprep.mubr.f32.mxu0 0.0
    %821 = vmatmul.mubr.f32.gmra.mrb[0].mxu0 %v748
    %v822 = vpop.f32.mrb[0].mxu0
    %v823 = vadd.f32 0.0, %v822
    %v824 = vpop.f32.mrb[0].mxu0
    %825 = vmatprep.mubr.f32.mxu0 0.0
    %826 = vmatmul.mubr.f32.gmra.mrb[0].mxu0 %v751
    %v827 = vpop.f32.mrb[0].mxu0
    %v828 = vadd.f32 0.0, %v827
    %v829 = vpop.f32.mrb[0].mxu0
    %830 = vmatprep.mubr.f32.mxu0 0.0
    %831 = vmatmul.mubr.f32.gmra.mrb[0].mxu0 %v754
    %v832 = vpop.f32.mrb[0].mxu0
    %v833 = vadd.f32 0.0, %v832
    %v834 = vpop.f32.mrb[0].mxu0
    %835 = vdwg.mxu0
    %v836 = vmax.f32 %v731, %v823
    %v837 = vmax.f32 %v736, %v828
    %v838 = vmax.f32 %v741, %v833
    %v839 = vld [vmem:[%s7] sm:$0xff]
    %v840 = vld [vmem:[%s7 + $0x8] sm:$0xff]
    %v841 = vld [vmem:[%s7 + $0x10] sm:$0xff]
    %v842 = vld [vmem:[%s7 + $0x18] sm:$0xff]
    %v843 = vld [vmem:[%s7 + $0x20] sm:$0xff]
    %v844 = vld [vmem:[%s7 + $0x28] sm:$0xff]
    %v845 = vld [vmem:[%s7 + $0x30] sm:$0xff]
    %v846 = vld [vmem:[%s7 + $0x38] sm:$0xff]
    %s847 = scalar_lea.vmem %s7, 64
    %v848 = vld [vmem:[%s847] sm:$0xff]
    %v849 = vld [vmem:[%s847 + $0x8] sm:$0xff]
    %v850 = vld [vmem:[%s847 + $0x10] sm:$0xff]
    %v851 = vld [vmem:[%s847 + $0x18] sm:$0xff]
    %v852 = vld [vmem:[%s847 + $0x20] sm:$0xff]
    %v853 = vld [vmem:[%s847 + $0x28] sm:$0xff]
    %v854 = vld [vmem:[%s847 + $0x30] sm:$0xff]
    %v855 = vld [vmem:[%s847 + $0x38] sm:$0xff]
    %vm859 = vcmask 1046528
    %v860 = vrot.slane %v836, 1
    %v861 = vrot.slane %v837, 1
    %v862 = vsel %vm859, %v860, %v861
    %v863 = vrot.slane %v838, 1
    %v864 = vsel %vm859, %v861, %v863
    %v865 = vsel %vm78, %v862, 0
    %v867 = vsel %vm78, %v864, 0
    %v869 = vsel %vm78, %v863, 0
    %871 = vmatprep.subr.mxu0 0.0
    %872 = vmatpush1.msra.mxu0 %v848
    %873 = vmatprep.subr.mxu0 0.0
    %874 = vmatpush1.msra.mxu0 %v849
    %875 = vmatprep.subr.mxu0 0.0
    %876 = vmatpush1.msra.mxu0 %v850
    %877 = vmatprep.subr.mxu0 0.0
    %878 = vmatpush1.msra.mxu0 %v851
    %879 = vmatprep.subr.mxu0 0.0
    %880 = vmatpush1.msra.mxu0 %v852
    %881 = vmatprep.subr.mxu0 0.0
    %882 = vmatpush1.msra.mxu0 %v853
    %883 = vmatprep.subr.mxu0 0.0
    %884 = vmatpush1.msra.mxu0 %v854
    %885 = vmatprep.subr.mxu0 0.0
    %886 = vmatpush1.msra.mxu0 %v855
    %887 = vmatprep.subr.mxu0 0.0
    %888 = vmatpush1.msra.mxu0 0.0
    %889 = vmatprep.subr.mxu0 0.0
    %890 = vmatpush1.msra.mxu0 0.0
    %891 = vmatprep.subr.mxu0 0.0
    %892 = vmatpush1.msra.mxu0 0.0
    %893 = vmatprep.subr.mxu0 0.0
    %894 = vmatpush1.msra.mxu0 0.0
    %895 = vmatprep.subr.mxu0 0.0
    %896 = vmatpush1.msra.mxu0 0.0
    %897 = vmatprep.subr.mxu0 0.0
    %898 = vmatpush1.msra.mxu0 0.0
    %899 = vmatprep.subr.mxu0 0.0
    %900 = vmatpush1.msra.mxu0 0.0
    %901 = vmatprep.subr.mxu0 0.0
    %902 = vmatpush1.msra.mxu0 0.0
    %903 = vmatprep.subr.mxu0 0.0
    %904 = vmatpush1.msra.mxu0 0.0
    %905 = vmatprep.subr.mxu0 0.0
    %906 = vmatpush1.msra.mxu0 0.0
    %907 = vmatprep.subr.mxu0 0.0
    %908 = vmatpush1.msra.mxu0 0.0
    %909 = vmatprep.subr.mxu0 0.0
    %910 = vmatpush1.msra.mxu0 0.0
    %911 = vmatprep.subr.mxu0 0.0
    %912 = vmatpush1.msra.mxu0 0.0
    %913 = vmatprep.subr.mxu0 0.0
    %914 = vmatpush1.msra.mxu0 0.0
    %915 = vmatprep.subr.mxu0 0.0
    %916 = vmatpush1.msra.mxu0 0.0
    %917 = vmatprep.subr.mxu0 0.0
    %918 = vmatpush1.msra.mxu0 0.0
    %919 = vmatprep.subr.mxu0 0.0
    %920 = vmatpush1.msra.mxu0 0.0
    %921 = vmatprep.subr.mxu0 0.0
    %922 = vmatpush1.msra.mxu0 0.0
    %923 = vmatprep.subr.mxu0 0.0
    %924 = vmatpush1.msra.mxu0 0.0
    %925 = vmatprep.subr.mxu0 0.0
    %926 = vmatpush1.msra.mxu0 0.0
    %927 = vmatprep.subr.mxu0 0.0
    %928 = vmatpush1.msra.mxu0 0.0
    %929 = vmatprep.subr.mxu0 0.0
    %930 = vmatpush1.msra.mxu0 0.0
    %931 = vmatprep.subr.mxu0 0.0
    %932 = vmatpush1.msra.mxu0 0.0
    %933 = vmatprep.subr.mxu0 0.0
    %934 = vmatpush1.msra.mxu0 0.0
    %935 = vmatprep.mubr.f32.mxu0 0.0
    %936 = vmatmul.mubr.f32.gmra.mrb[0].mxu0 %v865
    %v937 = vpop.f32.mrb[0].mxu0
    %v938 = vadd.f32 0.0, %v937
    %v939 = vpop.f32.mrb[0].mxu0
    %940 = vmatprep.mubr.f32.mxu0 0.0
    %941 = vmatmul.mubr.f32.gmra.mrb[0].mxu0 %v867
    %v942 = vpop.f32.mrb[0].mxu0
    %v943 = vadd.f32 0.0, %v942
    %v944 = vpop.f32.mrb[0].mxu0
    %945 = vmatprep.mubr.f32.mxu0 0.0
    %946 = vmatmul.mubr.f32.gmra.mrb[0].mxu0 %v869
    %v947 = vpop.f32.mrb[0].mxu0
    %v948 = vadd.f32 0.0, %v947
    %v949 = vpop.f32.mrb[0].mxu0
    %950 = vdwg.mxu0
    %v951 = vsel %vm78, %v836, 0
    %v953 = vsel %vm78, %v837, 0
    %v955 = vsel %vm78, %v838, 0
    %957 = vmatprep.subr.mxu0 0.0
    %958 = vmatpush1.msra.mxu0 %v839
    %959 = vmatprep.subr.mxu0 0.0
    %960 = vmatpush1.msra.mxu0 %v840
    %961 = vmatprep.subr.mxu0 0.0
    %962 = vmatpush1.msra.mxu0 %v841
    %963 = vmatprep.subr.mxu0 0.0
    %964 = vmatpush1.msra.mxu0 %v842
    %965 = vmatprep.subr.mxu0 0.0
    %966 = vmatpush1.msra.mxu0 %v843
    %967 = vmatprep.subr.mxu0 0.0
    %968 = vmatpush1.msra.mxu0 %v844
    %969 = vmatprep.subr.mxu0 0.0
    %970 = vmatpush1.msra.mxu0 %v845
    %971 = vmatprep.subr.mxu0 0.0
    %972 = vmatpush1.msra.mxu0 %v846
    %973 = vmatprep.subr.mxu0 0.0
    %974 = vmatpush1.msra.mxu0 0.0
    %975 = vmatprep.subr.mxu0 0.0
    %976 = vmatpush1.msra.mxu0 0.0
    %977 = vmatprep.subr.mxu0 0.0
    %978 = vmatpush1.msra.mxu0 0.0
    %979 = vmatprep.subr.mxu0 0.0
    %980 = vmatpush1.msra.mxu0 0.0
    %981 = vmatprep.subr.mxu0 0.0
    %982 = vmatpush1.msra.mxu0 0.0
    %983 = vmatprep.subr.mxu0 0.0
    %984 = vmatpush1.msra.mxu0 0.0
    %985 = vmatprep.subr.mxu0 0.0
    %986 = vmatpush1.msra.mxu0 0.0
    %987 = vmatprep.subr.mxu0 0.0
    %988 = vmatpush1.msra.mxu0 0.0
    %989 = vmatprep.subr.mxu0 0.0
    %990 = vmatpush1.msra.mxu0 0.0
    %991 = vmatprep.subr.mxu0 0.0
    %992 = vmatpush1.msra.mxu0 0.0
    %993 = vmatprep.subr.mxu0 0.0
    %994 = vmatpush1.msra.mxu0 0.0
    %995 = vmatprep.subr.mxu0 0.0
    %996 = vmatpush1.msra.mxu0 0.0
    %997 = vmatprep.subr.mxu0 0.0
    %998 = vmatpush1.msra.mxu0 0.0
    %999 = vmatprep.subr.mxu0 0.0
    %1000 = vmatpush1.msra.mxu0 0.0
    %1001 = vmatprep.subr.mxu0 0.0
    %1002 = vmatpush1.msra.mxu0 0.0
    %1003 = vmatprep.subr.mxu0 0.0
    %1004 = vmatpush1.msra.mxu0 0.0
    %1005 = vmatprep.subr.mxu0 0.0
    %1006 = vmatpush1.msra.mxu0 0.0
    %1007 = vmatprep.subr.mxu0 0.0
    %1008 = vmatpush1.msra.mxu0 0.0
    %1009 = vmatprep.subr.mxu0 0.0
    %1010 = vmatpush1.msra.mxu0 0.0
    %1011 = vmatprep.subr.mxu0 0.0
    %1012 = vmatpush1.msra.mxu0 0.0
    %1013 = vmatprep.subr.mxu0 0.0
    %1014 = vmatpush1.msra.mxu0 0.0
    %1015 = vmatprep.subr.mxu0 0.0
    %1016 = vmatpush1.msra.mxu0 0.0
    %1017 = vmatprep.subr.mxu0 0.0
    %1018 = vmatpush1.msra.mxu0 0.0
    %1019 = vmatprep.subr.mxu0 0.0
    %1020 = vmatpush1.msra.mxu0 0.0
    %1021 = vmatprep.mubr.f32.mxu0 0.0
    %1022 = vmatmul.mubr.f32.gmra.mrb[0].mxu0 %v951
    %v1023 = vpop.f32.mrb[0].mxu0
    %v1024 = vadd.f32 %v938, %v1023
    %v1025 = vpop.f32.mrb[0].mxu0
    %1026 = vmatprep.mubr.f32.mxu0 0.0
    %1027 = vmatmul.mubr.f32.gmra.mrb[0].mxu0 %v953
    %v1028 = vpop.f32.mrb[0].mxu0
    %v1029 = vadd.f32 %v943, %v1028
    %v1030 = vpop.f32.mrb[0].mxu0
    %1031 = vmatprep.mubr.f32.mxu0 0.0
    %1032 = vmatmul.mubr.f32.gmra.mrb[0].mxu0 %v955
    %v1033 = vpop.f32.mrb[0].mxu0
    %v1034 = vadd.f32 %v948, %v1033
    %v1035 = vpop.f32.mrb[0].mxu0
    %1036 = vdwg.mxu0
    %s1037 = scalar_lea.vmem %s7, 128
    %v1038 = vld [vmem:[%s1037] sm:$0xff]
    %v1039 = vld [vmem:[%s1037 + $0x8] sm:$0xff]
    %v1040 = vld [vmem:[%s1037 + $0x10] sm:$0xff]
    %v1041 = vld [vmem:[%s1037 + $0x18] sm:$0xff]
    %v1042 = vld [vmem:[%s1037 + $0x20] sm:$0xff]
    %v1043 = vld [vmem:[%s1037 + $0x28] sm:$0xff]
    %v1044 = vld [vmem:[%s1037 + $0x30] sm:$0xff]
    %v1045 = vld [vmem:[%s1037 + $0x38] sm:$0xff]
    %vm1046 = vcmask 1045504
    %v1047 = vrot.slane %v836, 2
    %v1048 = vrot.slane %v837, 2
    %v1049 = vsel %vm1046, %v1047, %v1048
    %v1050 = vrot.slane %v838, 2
    %v1051 = vsel %vm1046, %v1048, %v1050
    %v1052 = vsel %vm78, %v1049, 0
    %v1054 = vsel %vm78, %v1051, 0
    %v1056 = vsel %vm78, %v1050, 0
    %1058 = vmatprep.subr.mxu0 0.0
    %1059 = vmatpush1.msra.mxu0 %v1038
    %1060 = vmatprep.subr.mxu0 0.0
    %1061 = vmatpush1.msra.mxu0 %v1039
    %1062 = vmatprep.subr.mxu0 0.0
    %1063 = vmatpush1.msra.mxu0 %v1040
    %1064 = vmatprep.subr.mxu0 0.0
    %1065 = vmatpush1.msra.mxu0 %v1041
    %1066 = vmatprep.subr.mxu0 0.0
    %1067 = vmatpush1.msra.mxu0 %v1042
    %1068 = vmatprep.subr.mxu0 0.0
    %1069 = vmatpush1.msra.mxu0 %v1043
    %1070 = vmatprep.subr.mxu0 0.0
    %1071 = vmatpush1.msra.mxu0 %v1044
    %1072 = vmatprep.subr.mxu0 0.0
    %1073 = vmatpush1.msra.mxu0 %v1045
    %1074 = vmatprep.subr.mxu0 0.0
    %1075 = vmatpush1.msra.mxu0 0.0
    %1076 = vmatprep.subr.mxu0 0.0
    %1077 = vmatpush1.msra.mxu0 0.0
    %1078 = vmatprep.subr.mxu0 0.0
    %1079 = vmatpush1.msra.mxu0 0.0
    %1080 = vmatprep.subr.mxu0 0.0
    %1081 = vmatpush1.msra.mxu0 0.0
    %1082 = vmatprep.subr.mxu0 0.0
    %1083 = vmatpush1.msra.mxu0 0.0
    %1084 = vmatprep.subr.mxu0 0.0
    %1085 = vmatpush1.msra.mxu0 0.0
    %1086 = vmatprep.subr.mxu0 0.0
    %1087 = vmatpush1.msra.mxu0 0.0
    %1088 = vmatprep.subr.mxu0 0.0
    %1089 = vmatpush1.msra.mxu0 0.0
    %1090 = vmatprep.subr.mxu0 0.0
    %1091 = vmatpush1.msra.mxu0 0.0
    %1092 = vmatprep.subr.mxu0 0.0
    %1093 = vmatpush1.msra.mxu0 0.0
    %1094 = vmatprep.subr.mxu0 0.0
    %1095 = vmatpush1.msra.mxu0 0.0
    %1096 = vmatprep.subr.mxu0 0.0
    %1097 = vmatpush1.msra.mxu0 0.0
    %1098 = vmatprep.subr.mxu0 0.0
    %1099 = vmatpush1.msra.mxu0 0.0
    %1100 = vmatprep.subr.mxu0 0.0
    %1101 = vmatpush1.msra.mxu0 0.0
    %1102 = vmatprep.subr.mxu0 0.0
    %1103 = vmatpush1.msra.mxu0 0.0
    %1104 = vmatprep.subr.mxu0 0.0
    %1105 = vmatpush1.msra.mxu0 0.0
    %1106 = vmatprep.subr.mxu0 0.0
    %1107 = vmatpush1.msra.mxu0 0.0
    %1108 = vmatprep.subr.mxu0 0.0
    %1109 = vmatpush1.msra.mxu0 0.0
    %1110 = vmatprep.subr.mxu0 0.0
    %1111 = vmatpush1.msra.mxu0 0.0
    %1112 = vmatprep.subr.mxu0 0.0
    %1113 = vmatpush1.msra.mxu0 0.0
    %1114 = vmatprep.subr.mxu0 0.0
    %1115 = vmatpush1.msra.mxu0 0.0
    %1116 = vmatprep.subr.mxu0 0.0
    %1117 = vmatpush1.msra.mxu0 0.0
    %1118 = vmatprep.subr.mxu0 0.0
    %1119 = vmatpush1.msra.mxu0 0.0
    %1120 = vmatprep.subr.mxu0 0.0
    %1121 = vmatpush1.msra.mxu0 0.0
    %1122 = vmatprep.mubr.f32.mxu0 0.0
    %1123 = vmatmul.mubr.f32.gmra.mrb[0].mxu0 %v1052
    %v1124 = vpop.f32.mrb[0].mxu0
    %v1125 = vadd.f32 0.0, %v1124
    %v1126 = vpop.f32.mrb[0].mxu0
    %1127 = vmatprep.mubr.f32.mxu0 0.0
    %1128 = vmatmul.mubr.f32.gmra.mrb[0].mxu0 %v1054
    %v1129 = vpop.f32.mrb[0].mxu0
    %v1130 = vadd.f32 0.0, %v1129
    %v1131 = vpop.f32.mrb[0].mxu0
    %1132 = vmatprep.mubr.f32.mxu0 0.0
    %1133 = vmatmul.mubr.f32.gmra.mrb[0].mxu0 %v1056
    %v1134 = vpop.f32.mrb[0].mxu0
    %v1135 = vadd.f32 0.0, %v1134
    %v1136 = vpop.f32.mrb[0].mxu0
    %1137 = vdwg.mxu0
    %v1138 = vadd.f32 %v1024, %v1125
    %v1139 = vadd.f32 %v1029, %v1130
    %v1140 = vadd.f32 %v1034, %v1135
    %v1141 = vld [vmem:[%s8] sm:$0x1]
    %v1143 = vlaneseq
    %v1144 = vshrl.u32 %v1143, 7
    %v1145 = vsub.s32 0, %v1144
    %v1146 = vrot.slane %v1141, %v1145
    %v1148 = vadd.f32 %v1138, %v1146
    %v1149 = vadd.f32 %v1139, %v1146
    %v1150 = vadd.f32 %v1140, %v1146
    %v1151 = vmax.f32 %v1148, 0.0
    %v1152 = vmax.f32 %v1149, 0.0
    %v1153 = vmax.f32 %v1150, 0.0
    %v1154 = vld [vmem:[%s9] sm:$0xff]
    %v1155 = vld [vmem:[%s9 + $0x8] sm:$0xff]
    %v1156 = vld [vmem:[%s9 + $0x10] sm:$0xff]
    %v1157 = vld [vmem:[%s9 + $0x18] sm:$0xff]
    %v1158 = vld [vmem:[%s9 + $0x20] sm:$0xff]
    %v1159 = vld [vmem:[%s9 + $0x28] sm:$0xff]
    %v1160 = vld [vmem:[%s9 + $0x30] sm:$0xff]
    %v1161 = vld [vmem:[%s9 + $0x38] sm:$0xff]
    %v1162 = vld [vmem:[%s9 + $0x40] sm:$0xff]
    %v1163 = vld [vmem:[%s9 + $0x48] sm:$0xff]
    %v1164 = vld [vmem:[%s9 + $0x50] sm:$0xff]
    %v1165 = vld [vmem:[%s9 + $0x58] sm:$0xff]
    %v1166 = vld [vmem:[%s9 + $0x60] sm:$0xff]
    %v1167 = vld [vmem:[%s9 + $0x68] sm:$0xff]
    %v1168 = vld [vmem:[%s9 + $0x70] sm:$0xff]
    %v1169 = vld [vmem:[%s9 + $0x78] sm:$0xff]
    %1170 = vmatprep.subr.mxu0 0.0
    %1171 = vmatpush1.msra.mxu0 %v1154
    %1172 = vmatprep.subr.mxu0 0.0
    %1173 = vmatpush1.msra.mxu0 %v1155
    %1174 = vmatprep.subr.mxu0 0.0
    %1175 = vmatpush1.msra.mxu0 %v1156
    %1176 = vmatprep.subr.mxu0 0.0
    %1177 = vmatpush1.msra.mxu0 %v1157
    %1178 = vmatprep.subr.mxu0 0.0
    %1179 = vmatpush1.msra.mxu0 %v1158
    %1180 = vmatprep.subr.mxu0 0.0
    %1181 = vmatpush1.msra.mxu0 %v1159
    %1182 = vmatprep.subr.mxu0 0.0
    %1183 = vmatpush1.msra.mxu0 %v1160
    %1184 = vmatprep.subr.mxu0 0.0
    %1185 = vmatpush1.msra.mxu0 %v1161
    %1186 = vmatprep.subr.mxu0 0.0
    %1187 = vmatpush1.msra.mxu0 %v1162
    %1188 = vmatprep.subr.mxu0 0.0
    %1189 = vmatpush1.msra.mxu0 %v1163
    %1190 = vmatprep.subr.mxu0 0.0
    %1191 = vmatpush1.msra.mxu0 %v1164
    %1192 = vmatprep.subr.mxu0 0.0
    %1193 = vmatpush1.msra.mxu0 %v1165
    %1194 = vmatprep.subr.mxu0 0.0
    %1195 = vmatpush1.msra.mxu0 %v1166
    %1196 = vmatprep.subr.mxu0 0.0
    %1197 = vmatpush1.msra.mxu0 %v1167
    %1198 = vmatprep.subr.mxu0 0.0
    %1199 = vmatpush1.msra.mxu0 %v1168
    %1200 = vmatprep.subr.mxu0 0.0
    %1201 = vmatpush1.msra.mxu0 %v1169
    %1202 = vmatprep.subr.mxu0 0.0
    %1203 = vmatpush1.msra.mxu0 0.0
    %1204 = vmatprep.subr.mxu0 0.0
    %1205 = vmatpush1.msra.mxu0 0.0
    %1206 = vmatprep.subr.mxu0 0.0
    %1207 = vmatpush1.msra.mxu0 0.0
    %1208 = vmatprep.subr.mxu0 0.0
    %1209 = vmatpush1.msra.mxu0 0.0
    %1210 = vmatprep.subr.mxu0 0.0
    %1211 = vmatpush1.msra.mxu0 0.0
    %1212 = vmatprep.subr.mxu0 0.0
    %1213 = vmatpush1.msra.mxu0 0.0
    %1214 = vmatprep.subr.mxu0 0.0
    %1215 = vmatpush1.msra.mxu0 0.0
    %1216 = vmatprep.subr.mxu0 0.0
    %1217 = vmatpush1.msra.mxu0 0.0
    %1218 = vmatprep.subr.mxu0 0.0
    %1219 = vmatpush1.msra.mxu0 0.0
    %1220 = vmatprep.subr.mxu0 0.0
    %1221 = vmatpush1.msra.mxu0 0.0
    %1222 = vmatprep.subr.mxu0 0.0
    %1223 = vmatpush1.msra.mxu0 0.0
    %1224 = vmatprep.subr.mxu0 0.0
    %1225 = vmatpush1.msra.mxu0 0.0
    %1226 = vmatprep.subr.mxu0 0.0
    %1227 = vmatpush1.msra.mxu0 0.0
    %1228 = vmatprep.subr.mxu0 0.0
    %1229 = vmatpush1.msra.mxu0 0.0
    %1230 = vmatprep.subr.mxu0 0.0
    %1231 = vmatpush1.msra.mxu0 0.0
    %1232 = vmatprep.subr.mxu0 0.0
    %1233 = vmatpush1.msra.mxu0 0.0
    %1234 = vmatprep.mubr.f32.mxu0 0.0
    %1235 = vmatmul.mubr.f32.gmra.mrb[0].mxu0 %v1151
    %v1236 = vpop.f32.mrb[0].mxu0
    %v1237 = vadd.f32 0.0, %v1236
    %v1238 = vpop.f32.mrb[0].mxu0
    %1239 = vmatprep.mubr.f32.mxu0 0.0
    %1240 = vmatmul.mubr.f32.gmra.mrb[0].mxu0 %v1152
    %v1241 = vpop.f32.mrb[0].mxu0
    %v1242 = vadd.f32 0.0, %v1241
    %v1243 = vpop.f32.mrb[0].mxu0
    %1244 = vmatprep.mubr.f32.mxu0 0.0
    %1245 = vmatmul.mubr.f32.gmra.mrb[0].mxu0 %v1153
    %v1246 = vpop.f32.mrb[0].mxu0
    %v1247 = vadd.f32 0.0, %v1246
    %v1248 = vpop.f32.mrb[0].mxu0
    %1249 = vdwg.mxu0
    %v1250 = vld [vmem:[%s10] sm:$0xff]
    %v1251 = vld [vmem:[%s10 + $0x8] sm:$0xff]
    %v1252 = vld [vmem:[%s10 + $0x10] sm:$0xff]
    %v1253 = vld [vmem:[%s10 + $0x18] sm:$0xff]
    %v1254 = vld [vmem:[%s10 + $0x20] sm:$0xff]
    %v1255 = vld [vmem:[%s10 + $0x28] sm:$0xff]
    %v1256 = vld [vmem:[%s10 + $0x30] sm:$0xff]
    %v1257 = vld [vmem:[%s10 + $0x38] sm:$0xff]
    %v1258 = vld [vmem:[%s10 + $0x40] sm:$0xff]
    %v1259 = vld [vmem:[%s10 + $0x48] sm:$0xff]
    %v1260 = vld [vmem:[%s10 + $0x50] sm:$0xff]
    %v1261 = vld [vmem:[%s10 + $0x58] sm:$0xff]
    %v1262 = vld [vmem:[%s10 + $0x60] sm:$0xff]
    %v1263 = vld [vmem:[%s10 + $0x68] sm:$0xff]
    %v1264 = vld [vmem:[%s10 + $0x70] sm:$0xff]
    %v1265 = vld [vmem:[%s10 + $0x78] sm:$0xff]
    %1266 = vmatprep.subr.mxu0 0.0
    %1267 = vmatpush1.msra.mxu0 %v1250
    %1268 = vmatprep.subr.mxu0 0.0
    %1269 = vmatpush1.msra.mxu0 %v1251
    %1270 = vmatprep.subr.mxu0 0.0
    %1271 = vmatpush1.msra.mxu0 %v1252
    %1272 = vmatprep.subr.mxu0 0.0
    %1273 = vmatpush1.msra.mxu0 %v1253
    %1274 = vmatprep.subr.mxu0 0.0
    %1275 = vmatpush1.msra.mxu0 %v1254
    %1276 = vmatprep.subr.mxu0 0.0
    %1277 = vmatpush1.msra.mxu0 %v1255
    %1278 = vmatprep.subr.mxu0 0.0
    %1279 = vmatpush1.msra.mxu0 %v1256
    %1280 = vmatprep.subr.mxu0 0.0
    %1281 = vmatpush1.msra.mxu0 %v1257
    %1282 = vmatprep.subr.mxu0 0.0
    %1283 = vmatpush1.msra.mxu0 %v1258
    %1284 = vmatprep.subr.mxu0 0.0
    %1285 = vmatpush1.msra.mxu0 %v1259
    %1286 = vmatprep.subr.mxu0 0.0
    %1287 = vmatpush1.msra.mxu0 %v1260
    %1288 = vmatprep.subr.mxu0 0.0
    %1289 = vmatpush1.msra.mxu0 %v1261
    %1290 = vmatprep.subr.mxu0 0.0
    %1291 = vmatpush1.msra.mxu0 %v1262
    %1292 = vmatprep.subr.mxu0 0.0
    %1293 = vmatpush1.msra.mxu0 %v1263
    %1294 = vmatprep.subr.mxu0 0.0
    %1295 = vmatpush1.msra.mxu0 %v1264
    %1296 = vmatprep.subr.mxu0 0.0
    %1297 = vmatpush1.msra.mxu0 %v1265
    %1298 = vmatprep.subr.mxu0 0.0
    %1299 = vmatpush1.msra.mxu0 0.0
    %1300 = vmatprep.subr.mxu0 0.0
    %1301 = vmatpush1.msra.mxu0 0.0
    %1302 = vmatprep.subr.mxu0 0.0
    %1303 = vmatpush1.msra.mxu0 0.0
    %1304 = vmatprep.subr.mxu0 0.0
    %1305 = vmatpush1.msra.mxu0 0.0
    %1306 = vmatprep.subr.mxu0 0.0
    %1307 = vmatpush1.msra.mxu0 0.0
    %1308 = vmatprep.subr.mxu0 0.0
    %1309 = vmatpush1.msra.mxu0 0.0
    %1310 = vmatprep.subr.mxu0 0.0
    %1311 = vmatpush1.msra.mxu0 0.0
    %1312 = vmatprep.subr.mxu0 0.0
    %1313 = vmatpush1.msra.mxu0 0.0
    %1314 = vmatprep.subr.mxu0 0.0
    %1315 = vmatpush1.msra.mxu0 0.0
    %1316 = vmatprep.subr.mxu0 0.0
    %1317 = vmatpush1.msra.mxu0 0.0
    %1318 = vmatprep.subr.mxu0 0.0
    %1319 = vmatpush1.msra.mxu0 0.0
    %1320 = vmatprep.subr.mxu0 0.0
    %1321 = vmatpush1.msra.mxu0 0.0
    %1322 = vmatprep.subr.mxu0 0.0
    %1323 = vmatpush1.msra.mxu0 0.0
    %1324 = vmatprep.subr.mxu0 0.0
    %1325 = vmatpush1.msra.mxu0 0.0
    %1326 = vmatprep.subr.mxu0 0.0
    %1327 = vmatpush1.msra.mxu0 0.0
    %1328 = vmatprep.subr.mxu0 0.0
    %1329 = vmatpush1.msra.mxu0 0.0
    %1330 = vmatprep.mubr.f32.mxu0 0.0
    %1331 = vmatmul.mubr.f32.gmra.mrb[0].mxu0 %v1151
    %v1332 = vpop.f32.mrb[0].mxu0
    %v1333 = vadd.f32 0.0, %v1332
    %v1334 = vpop.f32.mrb[0].mxu0
    %1335 = vmatprep.mubr.f32.mxu0 0.0
    %1336 = vmatmul.mubr.f32.gmra.mrb[0].mxu0 %v1152
    %v1337 = vpop.f32.mrb[0].mxu0
    %v1338 = vadd.f32 0.0, %v1337
    %v1339 = vpop.f32.mrb[0].mxu0
    %1340 = vmatprep.mubr.f32.mxu0 0.0
    %1341 = vmatmul.mubr.f32.gmra.mrb[0].mxu0 %v1153
    %v1342 = vpop.f32.mrb[0].mxu0
    %v1343 = vadd.f32 0.0, %v1342
    %v1344 = vpop.f32.mrb[0].mxu0
    %1345 = vdwg.mxu0
    %v1346 = vmax.f32 %v1237, %v1333
    %v1347 = vmax.f32 %v1242, %v1338
    %v1348 = vmax.f32 %v1247, %v1343
    %v1349 = vld [vmem:[%s11] sm:$0xff]
    %vm1350 = vcmask 162816
    %v1352 = vsel %vm1350, %v1349, 0
    %v1355 = vsel %vm660, %v1348, 0
    %1357 = vmatprep.subr.mxu0 0.0
    %1358 = vmatpush1.msra.mxu0 %v1346
    %1359 = vmatprep.subr.mxu0 0.0
    %1360 = vmatpush1.msra.mxu0 %v1347
    %1361 = vmatprep.subr.mxu0 0.0
    %1362 = vmatpush1.msra.mxu0 %v1355
    %1363 = vmatprep.subr.mxu0 0.0
    %1364 = vmatpush1.msra.mxu0 0.0
    %1365 = vmatprep.subr.mxu0 0.0
    %1366 = vmatpush1.msra.mxu0 0.0
    %1367 = vmatprep.subr.mxu0 0.0
    %1368 = vmatpush1.msra.mxu0 0.0
    %1369 = vmatprep.subr.mxu0 0.0
    %1370 = vmatpush1.msra.mxu0 0.0
    %1371 = vmatprep.subr.mxu0 0.0
    %1372 = vmatpush1.msra.mxu0 0.0
    %1373 = vmatprep.subr.mxu0 0.0
    %1374 = vmatpush1.msra.mxu0 0.0
    %1375 = vmatprep.subr.mxu0 0.0
    %1376 = vmatpush1.msra.mxu0 0.0
    %1377 = vmatprep.subr.mxu0 0.0
    %1378 = vmatpush1.msra.mxu0 0.0
    %1379 = vmatprep.subr.mxu0 0.0
    %1380 = vmatpush1.msra.mxu0 0.0
    %1381 = vmatprep.subr.mxu0 0.0
    %1382 = vmatpush1.msra.mxu0 0.0
    %1383 = vmatprep.subr.mxu0 0.0
    %1384 = vmatpush1.msra.mxu0 0.0
    %1385 = vmatprep.subr.mxu0 0.0
    %1386 = vmatpush1.msra.mxu0 0.0
    %1387 = vmatprep.subr.mxu0 0.0
    %1388 = vmatpush1.msra.mxu0 0.0
    %1389 = vmatprep.subr.mxu0 0.0
    %1390 = vmatpush1.msra.mxu0 0.0
    %1391 = vmatprep.subr.mxu0 0.0
    %1392 = vmatpush1.msra.mxu0 0.0
    %1393 = vmatprep.subr.mxu0 0.0
    %1394 = vmatpush1.msra.mxu0 0.0
    %1395 = vmatprep.subr.mxu0 0.0
    %1396 = vmatpush1.msra.mxu0 0.0
    %1397 = vmatprep.subr.mxu0 0.0
    %1398 = vmatpush1.msra.mxu0 0.0
    %1399 = vmatprep.subr.mxu0 0.0
    %1400 = vmatpush1.msra.mxu0 0.0
    %1401 = vmatprep.subr.mxu0 0.0
    %1402 = vmatpush1.msra.mxu0 0.0
    %1403 = vmatprep.subr.mxu0 0.0
    %1404 = vmatpush1.msra.mxu0 0.0
    %1405 = vmatprep.subr.mxu0 0.0
    %1406 = vmatpush1.msra.mxu0 0.0
    %1407 = vmatprep.subr.mxu0 0.0
    %1408 = vmatpush1.msra.mxu0 0.0
    %1409 = vmatprep.subr.mxu0 0.0
    %1410 = vmatpush1.msra.mxu0 0.0
    %1411 = vmatprep.subr.mxu0 0.0
    %1412 = vmatpush1.msra.mxu0 0.0
    %1413 = vmatprep.subr.mxu0 0.0
    %1414 = vmatpush1.msra.mxu0 0.0
    %1415 = vmatprep.subr.mxu0 0.0
    %1416 = vmatpush1.msra.mxu0 0.0
    %1417 = vmatprep.subr.mxu0 0.0
    %1418 = vmatpush1.msra.mxu0 0.0
    %1419 = vmatprep.subr.mxu0 0.0
    %1420 = vmatpush1.msra.mxu0 0.0
    %1421 = vmatprep.mubr.f32.mxu0 0.0
    %1422 = vmatmul.mubr.f32.gmra.mrb[0].mxu0 %v1352
    %v1423 = vpop.f32.mrb[0].mxu0
    %v1424 = vadd.f32 0.0, %v1423
    %v1425 = vpop.f32.mrb[0].mxu0
    %1426 = vdwg.mxu0
    %v1427 = vld [vmem:[%s12] sm:$0xff]
    %v1429 = vsel %vm1350, %v1427, 0
    %1431 = vmatprep.subr.mxu0 0.0
    %1432 = vmatpush1.msra.mxu0 %v1346
    %1433 = vmatprep.subr.mxu0 0.0
    %1434 = vmatpush1.msra.mxu0 %v1347
    %1435 = vmatprep.subr.mxu0 0.0
    %1436 = vmatpush1.msra.mxu0 %v1355
    %1437 = vmatprep.subr.mxu0 0.0
    %1438 = vmatpush1.msra.mxu0 0.0
    %1439 = vmatprep.subr.mxu0 0.0
    %1440 = vmatpush1.msra.mxu0 0.0
    %1441 = vmatprep.subr.mxu0 0.0
    %1442 = vmatpush1.msra.mxu0 0.0
    %1443 = vmatprep.subr.mxu0 0.0
    %1444 = vmatpush1.msra.mxu0 0.0
    %1445 = vmatprep.subr.mxu0 0.0
    %1446 = vmatpush1.msra.mxu0 0.0
    %1447 = vmatprep.subr.mxu0 0.0
    %1448 = vmatpush1.msra.mxu0 0.0
    %1449 = vmatprep.subr.mxu0 0.0
    %1450 = vmatpush1.msra.mxu0 0.0
    %1451 = vmatprep.subr.mxu0 0.0
    %1452 = vmatpush1.msra.mxu0 0.0
    %1453 = vmatprep.subr.mxu0 0.0
    %1454 = vmatpush1.msra.mxu0 0.0
    %1455 = vmatprep.subr.mxu0 0.0
    %1456 = vmatpush1.msra.mxu0 0.0
    %1457 = vmatprep.subr.mxu0 0.0
    %1458 = vmatpush1.msra.mxu0 0.0
    %1459 = vmatprep.subr.mxu0 0.0
    %1460 = vmatpush1.msra.mxu0 0.0
    %1461 = vmatprep.subr.mxu0 0.0
    %1462 = vmatpush1.msra.mxu0 0.0
    %1463 = vmatprep.subr.mxu0 0.0
    %1464 = vmatpush1.msra.mxu0 0.0
    %1465 = vmatprep.subr.mxu0 0.0
    %1466 = vmatpush1.msra.mxu0 0.0
    %1467 = vmatprep.subr.mxu0 0.0
    %1468 = vmatpush1.msra.mxu0 0.0
    %1469 = vmatprep.subr.mxu0 0.0
    %1470 = vmatpush1.msra.mxu0 0.0
    %1471 = vmatprep.subr.mxu0 0.0
    %1472 = vmatpush1.msra.mxu0 0.0
    %1473 = vmatprep.subr.mxu0 0.0
    %1474 = vmatpush1.msra.mxu0 0.0
    %1475 = vmatprep.subr.mxu0 0.0
    %1476 = vmatpush1.msra.mxu0 0.0
    %1477 = vmatprep.subr.mxu0 0.0
    %1478 = vmatpush1.msra.mxu0 0.0
    %1479 = vmatprep.subr.mxu0 0.0
    %1480 = vmatpush1.msra.mxu0 0.0
    %1481 = vmatprep.subr.mxu0 0.0
    %1482 = vmatpush1.msra.mxu0 0.0
    %1483 = vmatprep.subr.mxu0 0.0
    %1484 = vmatpush1.msra.mxu0 0.0
    %1485 = vmatprep.subr.mxu0 0.0
    %1486 = vmatpush1.msra.mxu0 0.0
    %1487 = vmatprep.subr.mxu0 0.0
    %1488 = vmatpush1.msra.mxu0 0.0
    %1489 = vmatprep.subr.mxu0 0.0
    %1490 = vmatpush1.msra.mxu0 0.0
    %1491 = vmatprep.subr.mxu0 0.0
    %1492 = vmatpush1.msra.mxu0 0.0
    %1493 = vmatprep.subr.mxu0 0.0
    %1494 = vmatpush1.msra.mxu0 0.0
    %1495 = vmatprep.mubr.f32.mxu0 0.0
    %1496 = vmatmul.mubr.f32.gmra.mrb[0].mxu0 %v1429
    %v1497 = vpop.f32.mrb[0].mxu0
    %v1498 = vadd.f32 0.0, %v1497
    %v1499 = vpop.f32.mrb[0].mxu0
    %1500 = vdwg.mxu0
    %v1501 = vmax.f32 %v1424, %v1498
    %v1502 = vld [vmem:[%s13] sm:$0xff]
    %v1503 = vld [vmem:[%s13 + $0x8] sm:$0xff]
    %v1504 = vld [vmem:[%s13 + $0x10] sm:$0xff]
    %v1505 = vld [vmem:[%s13 + $0x18] sm:$0xff]
    %v1506 = vld [vmem:[%s13 + $0x20] sm:$0xff]
    %v1507 = vld [vmem:[%s13 + $0x28] sm:$0xff]
    %v1508 = vld [vmem:[%s13 + $0x30] sm:$0xff]
    %v1509 = vld [vmem:[%s13 + $0x38] sm:$0xff]
    %s1510 = scalar_lea.vmem %s13, 64
    %v1511 = vld [vmem:[%s1510] sm:$0xff]
    %v1512 = vld [vmem:[%s1510 + $0x8] sm:$0xff]
    %v1513 = vld [vmem:[%s1510 + $0x10] sm:$0xff]
    %v1514 = vld [vmem:[%s1510 + $0x18] sm:$0xff]
    %v1515 = vld [vmem:[%s1510 + $0x20] sm:$0xff]
    %v1516 = vld [vmem:[%s1510 + $0x28] sm:$0xff]
    %v1517 = vld [vmem:[%s1510 + $0x30] sm:$0xff]
    %v1518 = vld [vmem:[%s1510 + $0x38] sm:$0xff]
    %v1520 = vrot.slane %v1501, 2
    %v1521 = vsel %vm78, %v1520, 0
    %1523 = vmatprep.subr.mxu0 0.0
    %1524 = vmatpush1.msra.mxu0 %v1511
    %1525 = vmatprep.subr.mxu0 0.0
    %1526 = vmatpush1.msra.mxu0 %v1512
    %1527 = vmatprep.subr.mxu0 0.0
    %1528 = vmatpush1.msra.mxu0 %v1513
    %1529 = vmatprep.subr.mxu0 0.0
    %1530 = vmatpush1.msra.mxu0 %v1514
    %1531 = vmatprep.subr.mxu0 0.0
    %1532 = vmatpush1.msra.mxu0 %v1515
    %1533 = vmatprep.subr.mxu0 0.0
    %1534 = vmatpush1.msra.mxu0 %v1516
    %1535 = vmatprep.subr.mxu0 0.0
    %1536 = vmatpush1.msra.mxu0 %v1517
    %1537 = vmatprep.subr.mxu0 0.0
    %1538 = vmatpush1.msra.mxu0 %v1518
    %1539 = vmatprep.subr.mxu0 0.0
    %1540 = vmatpush1.msra.mxu0 0.0
    %1541 = vmatprep.subr.mxu0 0.0
    %1542 = vmatpush1.msra.mxu0 0.0
    %1543 = vmatprep.subr.mxu0 0.0
    %1544 = vmatpush1.msra.mxu0 0.0
    %1545 = vmatprep.subr.mxu0 0.0
    %1546 = vmatpush1.msra.mxu0 0.0
    %1547 = vmatprep.subr.mxu0 0.0
    %1548 = vmatpush1.msra.mxu0 0.0
    %1549 = vmatprep.subr.mxu0 0.0
    %1550 = vmatpush1.msra.mxu0 0.0
    %1551 = vmatprep.subr.mxu0 0.0
    %1552 = vmatpush1.msra.mxu0 0.0
    %1553 = vmatprep.subr.mxu0 0.0
    %1554 = vmatpush1.msra.mxu0 0.0
    %1555 = vmatprep.subr.mxu0 0.0
    %1556 = vmatpush1.msra.mxu0 0.0
    %1557 = vmatprep.subr.mxu0 0.0
    %1558 = vmatpush1.msra.mxu0 0.0
    %1559 = vmatprep.subr.mxu0 0.0
    %1560 = vmatpush1.msra.mxu0 0.0
    %1561 = vmatprep.subr.mxu0 0.0
    %1562 = vmatpush1.msra.mxu0 0.0
    %1563 = vmatprep.subr.mxu0 0.0
    %1564 = vmatpush1.msra.mxu0 0.0
    %1565 = vmatprep.subr.mxu0 0.0
    %1566 = vmatpush1.msra.mxu0 0.0
    %1567 = vmatprep.subr.mxu0 0.0
    %1568 = vmatpush1.msra.mxu0 0.0
    %1569 = vmatprep.subr.mxu0 0.0
    %1570 = vmatpush1.msra.mxu0 0.0
    %1571 = vmatprep.subr.mxu0 0.0
    %1572 = vmatpush1.msra.mxu0 0.0
    %1573 = vmatprep.subr.mxu0 0.0
    %1574 = vmatpush1.msra.mxu0 0.0
    %1575 = vmatprep.subr.mxu0 0.0
    %1576 = vmatpush1.msra.mxu0 0.0
    %1577 = vmatprep.subr.mxu0 0.0
    %1578 = vmatpush1.msra.mxu0 0.0
    %1579 = vmatprep.subr.mxu0 0.0
    %1580 = vmatpush1.msra.mxu0 0.0
    %1581 = vmatprep.subr.mxu0 0.0
    %1582 = vmatpush1.msra.mxu0 0.0
    %1583 = vmatprep.subr.mxu0 0.0
    %1584 = vmatpush1.msra.mxu0 0.0
    %1585 = vmatprep.subr.mxu0 0.0
    %1586 = vmatpush1.msra.mxu0 0.0
    %1587 = vmatprep.mubr.f32.mxu0 0.0
    %1588 = vmatmul.mubr.f32.gmra.mrb[0].mxu0 %v1521
    %v1589 = vpop.f32.mrb[0].mxu0
    %v1590 = vadd.f32 0.0, %v1589
    %v1591 = vpop.f32.mrb[0].mxu0
    %1592 = vdwg.mxu0
    %v1593 = vsel %vm78, %v1501, 0
    %1595 = vmatprep.subr.mxu0 0.0
    %1596 = vmatpush1.msra.mxu0 %v1502
    %1597 = vmatprep.subr.mxu0 0.0
    %1598 = vmatpush1.msra.mxu0 %v1503
    %1599 = vmatprep.subr.mxu0 0.0
    %1600 = vmatpush1.msra.mxu0 %v1504
    %1601 = vmatprep.subr.mxu0 0.0
    %1602 = vmatpush1.msra.mxu0 %v1505
    %1603 = vmatprep.subr.mxu0 0.0
    %1604 = vmatpush1.msra.mxu0 %v1506
    %1605 = vmatprep.subr.mxu0 0.0
    %1606 = vmatpush1.msra.mxu0 %v1507
    %1607 = vmatprep.subr.mxu0 0.0
    %1608 = vmatpush1.msra.mxu0 %v1508
    %1609 = vmatprep.subr.mxu0 0.0
    %1610 = vmatpush1.msra.mxu0 %v1509
    %1611 = vmatprep.subr.mxu0 0.0
    %1612 = vmatpush1.msra.mxu0 0.0
    %1613 = vmatprep.subr.mxu0 0.0
    %1614 = vmatpush1.msra.mxu0 0.0
    %1615 = vmatprep.subr.mxu0 0.0
    %1616 = vmatpush1.msra.mxu0 0.0
    %1617 = vmatprep.subr.mxu0 0.0
    %1618 = vmatpush1.msra.mxu0 0.0
    %1619 = vmatprep.subr.mxu0 0.0
    %1620 = vmatpush1.msra.mxu0 0.0
    %1621 = vmatprep.subr.mxu0 0.0
    %1622 = vmatpush1.msra.mxu0 0.0
    %1623 = vmatprep.subr.mxu0 0.0
    %1624 = vmatpush1.msra.mxu0 0.0
    %1625 = vmatprep.subr.mxu0 0.0
    %1626 = vmatpush1.msra.mxu0 0.0
    %1627 = vmatprep.subr.mxu0 0.0
    %1628 = vmatpush1.msra.mxu0 0.0
    %1629 = vmatprep.subr.mxu0 0.0
    %1630 = vmatpush1.msra.mxu0 0.0
    %1631 = vmatprep.subr.mxu0 0.0
    %1632 = vmatpush1.msra.mxu0 0.0
    %1633 = vmatprep.subr.mxu0 0.0
    %1634 = vmatpush1.msra.mxu0 0.0
    %1635 = vmatprep.subr.mxu0 0.0
    %1636 = vmatpush1.msra.mxu0 0.0
    %1637 = vmatprep.subr.mxu0 0.0
    %1638 = vmatpush1.msra.mxu0 0.0
    %1639 = vmatprep.subr.mxu0 0.0
    %1640 = vmatpush1.msra.mxu0 0.0
    %1641 = vmatprep.subr.mxu0 0.0
    %1642 = vmatpush1.msra.mxu0 0.0
    %1643 = vmatprep.subr.mxu0 0.0
    %1644 = vmatpush1.msra.mxu0 0.0
    %1645 = vmatprep.subr.mxu0 0.0
    %1646 = vmatpush1.msra.mxu0 0.0
    %1647 = vmatprep.subr.mxu0 0.0
    %1648 = vmatpush1.msra.mxu0 0.0
    %1649 = vmatprep.subr.mxu0 0.0
    %1650 = vmatpush1.msra.mxu0 0.0
    %1651 = vmatprep.subr.mxu0 0.0
    %1652 = vmatpush1.msra.mxu0 0.0
    %1653 = vmatprep.subr.mxu0 0.0
    %1654 = vmatpush1.msra.mxu0 0.0
    %1655 = vmatprep.subr.mxu0 0.0
    %1656 = vmatpush1.msra.mxu0 0.0
    %1657 = vmatprep.subr.mxu0 0.0
    %1658 = vmatpush1.msra.mxu0 0.0
    %1659 = vmatprep.mubr.f32.mxu0 0.0
    %1660 = vmatmul.mubr.f32.gmra.mrb[0].mxu0 %v1593
    %v1661 = vpop.f32.mrb[0].mxu0
    %v1662 = vadd.f32 %v1590, %v1661
    %v1663 = vpop.f32.mrb[0].mxu0
    %1664 = vdwg.mxu0
    %s1665 = scalar_lea.vmem %s13, 128
    %v1666 = vld [vmem:[%s1665] sm:$0xff]
    %v1667 = vld [vmem:[%s1665 + $0x8] sm:$0xff]
    %v1668 = vld [vmem:[%s1665 + $0x10] sm:$0xff]
    %v1669 = vld [vmem:[%s1665 + $0x18] sm:$0xff]
    %v1670 = vld [vmem:[%s1665 + $0x20] sm:$0xff]
    %v1671 = vld [vmem:[%s1665 + $0x28] sm:$0xff]
    %v1672 = vld [vmem:[%s1665 + $0x30] sm:$0xff]
    %v1673 = vld [vmem:[%s1665 + $0x38] sm:$0xff]
    %v1674 = vrot.slane %v1501, 4
    %v1675 = vsel %vm78, %v1674, 0
    %1677 = vmatprep.subr.mxu0 0.0
    %1678 = vmatpush1.msra.mxu0 %v1666
    %1679 = vmatprep.subr.mxu0 0.0
    %1680 = vmatpush1.msra.mxu0 %v1667
    %1681 = vmatprep.subr.mxu0 0.0
    %1682 = vmatpush1.msra.mxu0 %v1668
    %1683 = vmatprep.subr.mxu0 0.0
    %1684 = vmatpush1.msra.mxu0 %v1669
    %1685 = vmatprep.subr.mxu0 0.0
    %1686 = vmatpush1.msra.mxu0 %v1670
    %1687 = vmatprep.subr.mxu0 0.0
    %1688 = vmatpush1.msra.mxu0 %v1671
    %1689 = vmatprep.subr.mxu0 0.0
    %1690 = vmatpush1.msra.mxu0 %v1672
    %1691 = vmatprep.subr.mxu0 0.0
    %1692 = vmatpush1.msra.mxu0 %v1673
    %1693 = vmatprep.subr.mxu0 0.0
    %1694 = vmatpush1.msra.mxu0 0.0
    %1695 = vmatprep.subr.mxu0 0.0
    %1696 = vmatpush1.msra.mxu0 0.0
    %1697 = vmatprep.subr.mxu0 0.0
    %1698 = vmatpush1.msra.mxu0 0.0
    %1699 = vmatprep.subr.mxu0 0.0
    %1700 = vmatpush1.msra.mxu0 0.0
    %1701 = vmatprep.subr.mxu0 0.0
    %1702 = vmatpush1.msra.mxu0 0.0
    %1703 = vmatprep.subr.mxu0 0.0
    %1704 = vmatpush1.msra.mxu0 0.0
    %1705 = vmatprep.subr.mxu0 0.0
    %1706 = vmatpush1.msra.mxu0 0.0
    %1707 = vmatprep.subr.mxu0 0.0
    %1708 = vmatpush1.msra.mxu0 0.0
    %1709 = vmatprep.subr.mxu0 0.0
    %1710 = vmatpush1.msra.mxu0 0.0
    %1711 = vmatprep.subr.mxu0 0.0
    %1712 = vmatpush1.msra.mxu0 0.0
    %1713 = vmatprep.subr.mxu0 0.0
    %1714 = vmatpush1.msra.mxu0 0.0
    %1715 = vmatprep.subr.mxu0 0.0
    %1716 = vmatpush1.msra.mxu0 0.0
    %1717 = vmatprep.subr.mxu0 0.0
    %1718 = vmatpush1.msra.mxu0 0.0
    %1719 = vmatprep.subr.mxu0 0.0
    %1720 = vmatpush1.msra.mxu0 0.0
    %1721 = vmatprep.subr.mxu0 0.0
    %1722 = vmatpush1.msra.mxu0 0.0
    %1723 = vmatprep.subr.mxu0 0.0
    %1724 = vmatpush1.msra.mxu0 0.0
    %1725 = vmatprep.subr.mxu0 0.0
    %1726 = vmatpush1.msra.mxu0 0.0
    %1727 = vmatprep.subr.mxu0 0.0
    %1728 = vmatpush1.msra.mxu0 0.0
    %1729 = vmatprep.subr.mxu0 0.0
    %1730 = vmatpush1.msra.mxu0 0.0
    %1731 = vmatprep.subr.mxu0 0.0
    %1732 = vmatpush1.msra.mxu0 0.0
    %1733 = vmatprep.subr.mxu0 0.0
    %1734 = vmatpush1.msra.mxu0 0.0
    %1735 = vmatprep.subr.mxu0 0.0
    %1736 = vmatpush1.msra.mxu0 0.0
    %1737 = vmatprep.subr.mxu0 0.0
    %1738 = vmatpush1.msra.mxu0 0.0
    %1739 = vmatprep.subr.mxu0 0.0
    %1740 = vmatpush1.msra.mxu0 0.0
    %1741 = vmatprep.mubr.f32.mxu0 0.0
    %1742 = vmatmul.mubr.f32.gmra.mrb[0].mxu0 %v1675
    %v1743 = vpop.f32.mrb[0].mxu0
    %v1744 = vadd.f32 0.0, %v1743
    %v1745 = vpop.f32.mrb[0].mxu0
    %1746 = vdwg.mxu0
    %v1747 = vadd.f32 %v1662, %v1744
    %s1748 = scalar_lea.vmem %s13, 192
    %v1749 = vld [vmem:[%s1748] sm:$0xff]
    %v1750 = vld [vmem:[%s1748 + $0x8] sm:$0xff]
    %v1751 = vld [vmem:[%s1748 + $0x10] sm:$0xff]
    %v1752 = vld [vmem:[%s1748 + $0x18] sm:$0xff]
    %v1753 = vld [vmem:[%s1748 + $0x20] sm:$0xff]
    %v1754 = vld [vmem:[%s1748 + $0x28] sm:$0xff]
    %v1755 = vld [vmem:[%s1748 + $0x30] sm:$0xff]
    %v1756 = vld [vmem:[%s1748 + $0x38] sm:$0xff]
    %v1757 = vrot.slane %v1501, 6
    %v1758 = vsel %vm78, %v1757, 0
    %1760 = vmatprep.subr.mxu0 0.0
    %1761 = vmatpush1.msra.mxu0 %v1749
    %1762 = vmatprep.subr.mxu0 0.0
    %1763 = vmatpush1.msra.mxu0 %v1750
    %1764 = vmatprep.subr.mxu0 0.0
    %1765 = vmatpush1.msra.mxu0 %v1751
    %1766 = vmatprep.subr.mxu0 0.0
    %1767 = vmatpush1.msra.mxu0 %v1752
    %1768 = vmatprep.subr.mxu0 0.0
    %1769 = vmatpush1.msra.mxu0 %v1753
    %1770 = vmatprep.subr.mxu0 0.0
    %1771 = vmatpush1.msra.mxu0 %v1754
    %1772 = vmatprep.subr.mxu0 0.0
    %1773 = vmatpush1.msra.mxu0 %v1755
    %1774 = vmatprep.subr.mxu0 0.0
    %1775 = vmatpush1.msra.mxu0 %v1756
    %1776 = vmatprep.subr.mxu0 0.0
    %1777 = vmatpush1.msra.mxu0 0.0
    %1778 = vmatprep.subr.mxu0 0.0
    %1779 = vmatpush1.msra.mxu0 0.0
    %1780 = vmatprep.subr.mxu0 0.0
    %1781 = vmatpush1.msra.mxu0 0.0
    %1782 = vmatprep.subr.mxu0 0.0
    %1783 = vmatpush1.msra.mxu0 0.0
    %1784 = vmatprep.subr.mxu0 0.0
    %1785 = vmatpush1.msra.mxu0 0.0
    %1786 = vmatprep.subr.mxu0 0.0
    %1787 = vmatpush1.msra.mxu0 0.0
    %1788 = vmatprep.subr.mxu0 0.0
    %1789 = vmatpush1.msra.mxu0 0.0
    %1790 = vmatprep.subr.mxu0 0.0
    %1791 = vmatpush1.msra.mxu0 0.0
    %1792 = vmatprep.subr.mxu0 0.0
    %1793 = vmatpush1.msra.mxu0 0.0
    %1794 = vmatprep.subr.mxu0 0.0
    %1795 = vmatpush1.msra.mxu0 0.0
    %1796 = vmatprep.subr.mxu0 0.0
    %1797 = vmatpush1.msra.mxu0 0.0
    %1798 = vmatprep.subr.mxu0 0.0
    %1799 = vmatpush1.msra.mxu0 0.0
    %1800 = vmatprep.subr.mxu0 0.0
    %1801 = vmatpush1.msra.mxu0 0.0
    %1802 = vmatprep.subr.mxu0 0.0
    %1803 = vmatpush1.msra.mxu0 0.0
    %1804 = vmatprep.subr.mxu0 0.0
    %1805 = vmatpush1.msra.mxu0 0.0
    %1806 = vmatprep.subr.mxu0 0.0
    %1807 = vmatpush1.msra.mxu0 0.0
    %1808 = vmatprep.subr.mxu0 0.0
    %1809 = vmatpush1.msra.mxu0 0.0
    %1810 = vmatprep.subr.mxu0 0.0
    %1811 = vmatpush1.msra.mxu0 0.0
    %1812 = vmatprep.subr.mxu0 0.0
    %1813 = vmatpush1.msra.mxu0 0.0
    %1814 = vmatprep.subr.mxu0 0.0
    %1815 = vmatpush1.msra.mxu0 0.0
    %1816 = vmatprep.subr.mxu0 0.0
    %1817 = vmatpush1.msra.mxu0 0.0
    %1818 = vmatprep.subr.mxu0 0.0
    %1819 = vmatpush1.msra.mxu0 0.0
    %1820 = vmatprep.subr.mxu0 0.0
    %1821 = vmatpush1.msra.mxu0 0.0
    %1822 = vmatprep.subr.mxu0 0.0
    %1823 = vmatpush1.msra.mxu0 0.0
    %1824 = vmatprep.mubr.f32.mxu0 0.0
    %1825 = vmatmul.mubr.f32.gmra.mrb[0].mxu0 %v1758
    %v1826 = vpop.f32.mrb[0].mxu0
    %v1827 = vadd.f32 0.0, %v1826
    %v1828 = vpop.f32.mrb[0].mxu0
    %1829 = vdwg.mxu0
    %v1830 = vadd.f32 %v1747, %v1827
    %v1831 = vld [vmem:[%s14] sm:$0x1]
    %v1833 = vlaneseq
    %v1834 = vshrl.u32 %v1833, 7
    %v1835 = vsub.s32 0, %v1834
    %v1836 = vrot.slane %v1831, %v1835
    %v1838 = vadd.f32 %v1830, %v1836
    %vm1839 = vcmask 74752
    %1840 = vst.msk [vmem:[#allocation2] sm:$0x3] %vm1839, %v1838
    // Predicated region
    $region62: #{ensemble_forward.1} parent=1 // pred_check
      _
    $region63: #{ensemble_forward.1} parent=1 // pred_check_branch
      %1842 = sbr.rel (0) target = $region65
    $region64: #{ensemble_forward.1} parent=1 // pred_region
      %s1844 = ssub.s32 32, 32
      %1845 = vsyncadd [#allocation3], %s1844
      %s1847 = sshll.u32 [#allocation2], 4
      %s1848 = int_to_ptr.vmem [resolvable:$true] %s1847
      %1850 = dma.vmem_to_hbm [thread:$0]  %s1848, 32, %s15, [#allocation3]
    $region65: #{ensemble_forward.1} parent=1 // pred_fallthru
      _
    // Predicated region
    $region66: #{ensemble_forward.1} parent=1 // pred_check
      _
    $region67: #{ensemble_forward.1} parent=1 // pred_check_branch
      %1852 = sbr.rel (0) target = $region69
    $region68: #{ensemble_forward.1} parent=1 // pred_region
      %1853 = dma.done [#allocation3], 32
    $region69: #{ensemble_forward.1} parent=1 // pred_fallthru
      _
    %1854 = vsyncpa [#allocation3], 1

</llo_original>
